<compile_context>
chip_gen: v6e
topology: v6e:2x2x1
jax: 0.10.0
libtpu: 0.0.40
codegen_flags: <defaults>
</compile_context>

<pallas_src>
import functools

import jax
import jax.numpy as jnp
import numpy as np
from jax.experimental import pallas as pl
from jax.experimental.pallas import tpu as pltpu


def _layer_norm(x, gamma, beta, eps=1e-5):
    # x: (TQ, H), gamma/beta: (1, H); biased variance like torch.nn.LayerNorm
    mean = jnp.mean(x, axis=-1, keepdims=True)
    var = jnp.mean((x - mean) ** 2, axis=-1, keepdims=True)
    inv = jax.lax.rsqrt(var + eps)
    return (x - mean) * inv * gamma + beta


def encoder_layer_kernel(
    # per-grid-step inputs
    xq_ref,      # (TQ, H)  query rows of src (f32)
    xkv_ref,     # (S, H)   full src rows for K/V (f32)
    mask_ref,    # (1, S)   0 = masked key position (f32)
    # grid-invariant parameters (weight matrices in bf16, rest f32)
    wq_ref, bq_ref, wk_ref, bk_ref, wv_ref, bv_ref, wo_ref, bo_ref,
    g1_ref, be1_ref,
    w1_ref, bf1_ref, w2_ref, bf2_ref,
    g2_ref, be2_ref,
    # output
    out_ref,     # (TQ, H)
    # scratch
    ctx_ref,     # (TQ, H) f32 VMEM — per-head context written at lane slices
    *, n_heads: int, head_dim: int,
):
    f32 = jnp.float32
    bf16 = jnp.bfloat16

    xq = xq_ref[...]                      # (TQ, H) f32, kept for the residual
    xq_b = xq.astype(bf16)
    xkv_b = xkv_ref[...].astype(bf16)     # (S, H)

    # mask bias computed once (hoisted out of the head loop)
    mask_bias = jnp.where(mask_ref[...] == 0, f32(-1e10), f32(0.0))   # (1, S)
    inv_scale = f32(1.0 / np.sqrt(head_dim))

    # ---- projections (bf16 operands, f32 accumulation on the MXU) --------
    q = jnp.dot(xq_b, wq_ref[...], preferred_element_type=f32) + bq_ref[...]
    k = jnp.dot(xkv_b, wk_ref[...], preferred_element_type=f32) + bk_ref[...]
    v = jnp.dot(xkv_b, wv_ref[...], preferred_element_type=f32) + bv_ref[...]

    q_b = (q * inv_scale).astype(bf16)    # fold softmax scale into Q once
    kt_b = k.astype(bf16).T               # (H, S): transpose K once (one XLU pass)
    v_b = v.astype(bf16)

    # ---- multi-head attention (static unroll over heads) ------------------
    for h in range(n_heads):
        lo = h * head_dim
        hi = lo + head_dim
        energy = jnp.dot(q_b[:, lo:hi], kt_b[lo:hi, :],
                         preferred_element_type=f32) + mask_bias      # (TQ, S)
        e_max = jnp.max(energy, axis=-1, keepdims=True)
        p = jnp.exp(energy - e_max)
        denom = jnp.sum(p, axis=-1, keepdims=True)
        attn = p * pl.reciprocal(denom, approx=True)
        # write this head's context directly into the (TQ, H) scratch slab
        ctx_ref[:, lo:hi] = jnp.dot(attn.astype(bf16), v_b[:, lo:hi],
                                    preferred_element_type=f32)

    attn_out = jnp.dot(ctx_ref[...].astype(bf16), wo_ref[...],
                       preferred_element_type=f32) + bo_ref[...]

    # residual + layernorm 1 (dropout == identity); layernorm stays f32
    h1 = _layer_norm(xq + attn_out, g1_ref[...], be1_ref[...])

    # ---- position-wise feedforward ----------------------------------------
    ff = jnp.dot(h1.astype(bf16), w1_ref[...],
                 preferred_element_type=f32) + bf1_ref[...]
    ff = jnp.maximum(ff, 0.0)
    ff = jnp.dot(ff.astype(bf16), w2_ref[...],
                 preferred_element_type=f32) + bf2_ref[...]

    # residual + layernorm 2
    out = _layer_norm(h1 + ff, g2_ref[...], be2_ref[...])
    out_ref[...] = out.astype(out_ref.dtype)


def encoder_layer(src, src_mask, params, *, n_heads, q_tile=None):
    """One EncoderLayer forward.  src: (B, S, H) f32, src_mask: (B, 1, S)."""
    B, S, H = src.shape
    head_dim = H // n_heads
    pf_dim = params["w1"].shape[1]

    if q_tile is None:
        q_tile = S if S <= 128 else 128
    assert S % q_tile == 0, "sequence length must be divisible by the query tile"
    nq = S // q_tile

    bf16 = jnp.bfloat16
    f32 = jnp.float32

    def wspec(shape):
        # grid-invariant parameter: constant block index -> DMA'd once.
        return pl.BlockSpec(shape, lambda b, qi: (0,) * len(shape))

    in_specs = [
        # src twice: a query-row tile and the full rows for K/V
        pl.BlockSpec((None, q_tile, H), lambda b, qi: (b, qi, 0)),
        pl.BlockSpec((None, S, H), lambda b, qi: (b, 0, 0)),
        pl.BlockSpec((None, 1, S), lambda b, qi: (b, 0, 0)),
        wspec((H, H)), wspec((1, H)),            # Wq, bq
        wspec((H, H)), wspec((1, H)),            # Wk, bk
        wspec((H, H)), wspec((1, H)),            # Wv, bv
        wspec((H, H)), wspec((1, H)),            # Wo, bo
        wspec((1, H)), wspec((1, H)),            # ln1 gamma, beta
        wspec((H, pf_dim)), wspec((1, pf_dim)),  # W1, b1
        wspec((pf_dim, H)), wspec((1, H)),       # W2, b2
        wspec((1, H)), wspec((1, H)),            # ln2 gamma, beta
    ]

    kernel = functools.partial(
        encoder_layer_kernel, n_heads=n_heads, head_dim=head_dim
    )

    flops = 2 * B * S * (4 * H * H + 2 * S * H + 2 * H * pf_dim)
    transcendentals = B * n_heads * S * S
    bytes_accessed = (
        2 * B * S * H * 4                       # src in + out (f32)
        + B * S * 4                             # mask
        + (4 * H * H + 2 * H * pf_dim) * 2      # bf16 weight matrices
        + (6 * H + pf_dim) * 4                  # biases + layernorm params
    )

    return pl.pallas_call(
        kernel,
        out_shape=jax.ShapeDtypeStruct((B, S, H), f32),
        grid_spec=pltpu.PrefetchScalarGridSpec(
            num_scalar_prefetch=0,
            grid=(B, nq),
            in_specs=in_specs,
            out_specs=pl.BlockSpec((None, q_tile, H), lambda b, qi: (b, qi, 0)),
            scratch_shapes=[pltpu.VMEM((q_tile, H), f32)],
        ),
        compiler_params=pltpu.CompilerParams(
            dimension_semantics=("parallel", "parallel"),
            vmem_limit_bytes=48 * 1024 * 1024,
        ),
        cost_estimate=pl.CostEstimate(
            flops=flops,
            transcendentals=transcendentals,
            bytes_accessed=bytes_accessed,
        ),
    )(
        src, src, src_mask,
        params["wq"].astype(bf16), params["bq"],
        params["wk"].astype(bf16), params["bk"],
        params["wv"].astype(bf16), params["bv"],
        params["wo"].astype(bf16), params["bo"],
        params["g1"], params["be1"],
        params["w1"].astype(bf16), params["bf1"],
        params["w2"].astype(bf16), params["bf2"],
        params["g2"], params["be2"],
    )


def encoder_forward(tokens, src_mask, params, *, n_heads):
    """Full Encoder forward: embeddings + n_layers EncoderLayers (eval mode)."""
    B, S = tokens.shape
    H = params["tok_emb"].shape[1]
    # TODO(synk): token/positional embedding lookup (nn.Embedding gather) has
    # no clean rectangular-tile Pallas equivalent; it is done in plain JAX.
    x = (jnp.take(params["tok_emb"], tokens, axis=0) * jnp.sqrt(jnp.float32(H))
         + params["pos_emb"][:S][None, :, :])
    for layer_params in params["layers"]:
        x = encoder_layer(x, src_mask, layer_params, n_heads=n_heads)
    return x


# ---------------------------------------------------------------------------
# Pure-JAX reference (matches the PyTorch module in eval mode, f32 math)
# ---------------------------------------------------------------------------
def reference_encoder_layer(src, src_mask, p, *, n_heads):
    B, S, H = src.shape
    hd = H // n_heads
    scale = np.sqrt(hd).astype(np.float32)

    def ln(x, g, b, eps=1e-5):
        m = jnp.mean(x, axis=-1, keepdims=True)
        v = jnp.mean((x - m) ** 2, axis=-1, keepdims=True)
        return (x - m) / jnp.sqrt(v + eps) * g + b

    q = src @ p["wq"] + p["bq"]
    k = src @ p["wk"] + p["bk"]
    v = src @ p["wv"] + p["bv"]
    q = q.reshape(B, S, n_heads, hd).transpose(0, 2, 1, 3)
    k = k.reshape(B, S, n_heads, hd).transpose(0, 2, 1, 3)
    v = v.reshape(B, S, n_heads, hd).transpose(0, 2, 1, 3)
    energy = jnp.einsum("bhqd,bhkd->bhqk", q, k) / scale
    mask = src_mask[:, None, :, :]
    energy = jnp.where(mask == 0, -1e10, energy)
    attn = jax.nn.softmax(energy, axis=-1)
    ctx = jnp.einsum("bhqk,bhkd->bhqd", attn, v)
    ctx = ctx.transpose(0, 2, 1, 3).reshape(B, S, H)
    attn_out = ctx @ p["wo"] + p["bo"]
    h1 = ln(src + attn_out, p["g1"], p["be1"])
    ff = jnp.maximum(h1 @ p["w1"] + p["bf1"], 0.0)
    ff = ff @ p["w2"] + p["bf2"]
    return ln(h1 + ff, p["g2"], p["be2"])


def reference_encoder(tokens, src_mask, params, *, n_heads):
    B, S = tokens.shape
    H = params["tok_emb"].shape[1]
    x = (jnp.take(params["tok_emb"], tokens, axis=0) * jnp.sqrt(jnp.float32(H))
         + params["pos_emb"][:S][None, :, :])
    for layer_params in params["layers"]:
        x = reference_encoder_layer(x, src_mask, layer_params, n_heads=n_heads)
    return x


if __name__ == "__main__":
    B, S, H = 2, 8, 32
    n_heads = 4
    pf_dim = 64
    n_layers = 2
    input_dim = 50
    max_length = 100

    key = jax.random.PRNGKey(0)
    key, emb_k, pos_k, tok_k = jax.random.split(key, 4)

    def w(k, shape, scale=0.05):
        return (scale * jax.random.normal(k, shape)).astype(jnp.float32)

    def init_layer(k):
        ks = jax.random.split(k, 12)
        return {
            "wq": w(ks[0], (H, H)), "bq": w(ks[1], (1, H)),
            "wk": w(ks[2], (H, H)), "bk": w(ks[3], (1, H)),
            "wv": w(ks[4], (H, H)), "bv": w(ks[5], (1, H)),
            "wo": w(ks[6], (H, H)), "bo": w(ks[7], (1, H)),
            "g1": jnp.ones((1, H), jnp.float32), "be1": jnp.zeros((1, H), jnp.float32),
            "w1": w(ks[8], (H, pf_dim)), "bf1": w(ks[9], (1, pf_dim)),
            "w2": w(ks[10], (pf_dim, H)), "bf2": w(ks[11], (1, H)),
            "g2": jnp.ones((1, H), jnp.float32), "be2": jnp.zeros((1, H), jnp.float32),
        }

    layer_keys = jax.random.split(key, n_layers)
    params = {
        "tok_emb": (0.1 * jax.random.normal(emb_k, (input_dim, H))).astype(jnp.float32),
        "pos_emb": (0.1 * jax.random.normal(pos_k, (max_length, H))).astype(jnp.float32),
        "layers": [init_layer(k) for k in layer_keys],
    }

    tokens = jax.random.randint(tok_k, (B, S), 0, input_dim, dtype=jnp.int32)
    # mask out the last two key positions of batch element 1
    mask_np = np.ones((B, 1, S), dtype=np.float32)
    mask_np[1, 0, -2:] = 0.0
    src_mask = jnp.asarray(mask_np)

    out = encoder_forward(tokens, src_mask, params, n_heads=n_heads)
    out = jax.block_until_ready(out)

    ref = reference_encoder(tokens, src_mask, params, n_heads=n_heads)
    # bf16 MXU operands + approx reciprocal -> relaxed tolerance vs f32 reference
    np.testing.assert_allclose(np.asarray(out), np.asarray(ref), rtol=5e-2, atol=5e-2)

    print("KERNEL_OK")
</pallas_src>

<mosaic_0001>
module attributes {stable_mosaic.version = 11 : i64} {
  func.func @encoder_layer_kernel(%arg0: i32, %arg1: i32, %arg2: memref<1x8x32xf32, #tpu.memory_space<vmem>>, %arg3: memref<1x8x32xf32, #tpu.memory_space<vmem>>, %arg4: memref<1x1x8xf32, #tpu.memory_space<vmem>>, %arg5: memref<32x32xbf16, #tpu.memory_space<vmem>>, %arg6: memref<1x32xf32, #tpu.memory_space<vmem>>, %arg7: memref<32x32xbf16, #tpu.memory_space<vmem>>, %arg8: memref<1x32xf32, #tpu.memory_space<vmem>>, %arg9: memref<32x32xbf16, #tpu.memory_space<vmem>>, %arg10: memref<1x32xf32, #tpu.memory_space<vmem>>, %arg11: memref<32x32xbf16, #tpu.memory_space<vmem>>, %arg12: memref<1x32xf32, #tpu.memory_space<vmem>>, %arg13: memref<1x32xf32, #tpu.memory_space<vmem>>, %arg14: memref<1x32xf32, #tpu.memory_space<vmem>>, %arg15: memref<32x64xbf16, #tpu.memory_space<vmem>>, %arg16: memref<1x64xf32, #tpu.memory_space<vmem>>, %arg17: memref<64x32xbf16, #tpu.memory_space<vmem>>, %arg18: memref<1x32xf32, #tpu.memory_space<vmem>>, %arg19: memref<1x32xf32, #tpu.memory_space<vmem>>, %arg20: memref<1x32xf32, #tpu.memory_space<vmem>>, %arg21: memref<1x8x32xf32, #tpu.memory_space<vmem>>, %arg22: memref<8x32xf32, #tpu.memory_space<vmem>>) attributes {dimension_semantics = [#tpu.dimension_semantics<parallel>, #tpu.dimension_semantics<parallel>], iteration_bounds = array<i64: 2, 1>, scalar_prefetch = 0 : i64, scratch_operands = 1 : i64, tpu.core_type = #tpu.core_type<tc>, window_params = [{transform_indices = @transform_0, window_bounds = array<i64: 1, 8, 32>}, {transform_indices = @transform_1, window_bounds = array<i64: 1, 8, 32>}, {transform_indices = @transform_2, window_bounds = array<i64: 1, 1, 8>}, {pipeline_mode = #tpu.pipeline_mode<synchronous>, transform_indices = @transform_3, window_bounds = array<i64: 32, 32>}, {pipeline_mode = #tpu.pipeline_mode<synchronous>, transform_indices = @transform_4, window_bounds = array<i64: 1, 32>}, {pipeline_mode = #tpu.pipeline_mode<synchronous>, transform_indices = @transform_5, window_bounds = array<i64: 32, 32>}, {pipeline_mode = #tpu.pipeline_mode<synchronous>, transform_indices = @transform_6, window_bounds = array<i64: 1, 32>}, {pipeline_mode = #tpu.pipeline_mode<synchronous>, transform_indices = @transform_7, window_bounds = array<i64: 32, 32>}, {pipeline_mode = #tpu.pipeline_mode<synchronous>, transform_indices = @transform_8, window_bounds = array<i64: 1, 32>}, {pipeline_mode = #tpu.pipeline_mode<synchronous>, transform_indices = @transform_9, window_bounds = array<i64: 32, 32>}, {pipeline_mode = #tpu.pipeline_mode<synchronous>, transform_indices = @transform_10, window_bounds = array<i64: 1, 32>}, {pipeline_mode = #tpu.pipeline_mode<synchronous>, transform_indices = @transform_11, window_bounds = array<i64: 1, 32>}, {pipeline_mode = #tpu.pipeline_mode<synchronous>, transform_indices = @transform_12, window_bounds = array<i64: 1, 32>}, {pipeline_mode = #tpu.pipeline_mode<synchronous>, transform_indices = @transform_13, window_bounds = array<i64: 32, 64>}, {pipeline_mode = #tpu.pipeline_mode<synchronous>, transform_indices = @transform_14, window_bounds = array<i64: 1, 64>}, {pipeline_mode = #tpu.pipeline_mode<synchronous>, transform_indices = @transform_15, window_bounds = array<i64: 64, 32>}, {pipeline_mode = #tpu.pipeline_mode<synchronous>, transform_indices = @transform_16, window_bounds = array<i64: 1, 32>}, {pipeline_mode = #tpu.pipeline_mode<synchronous>, transform_indices = @transform_17, window_bounds = array<i64: 1, 32>}, {pipeline_mode = #tpu.pipeline_mode<synchronous>, transform_indices = @transform_18, window_bounds = array<i64: 1, 32>}, {transform_indices = @transform_19, window_bounds = array<i64: 1, 8, 32>}]} {
    %c0 = arith.constant 0 : index
    %c0_0 = arith.constant 0 : index
    %c0_1 = arith.constant 0 : index
    %0 = vector.load %arg2[%c0, %c0_0, %c0_1] : memref<1x8x32xf32, #tpu.memory_space<vmem>>, vector<1x8x32xf32>
    %1 = vector.shape_cast %0 : vector<1x8x32xf32> to vector<8x32xf32>
    %2 = arith.truncf %1 : vector<8x32xf32> to vector<8x32xbf16>
    %c0_2 = arith.constant 0 : index
    %c0_3 = arith.constant 0 : index
    %c0_4 = arith.constant 0 : index
    %3 = vector.load %arg3[%c0_2, %c0_3, %c0_4] : memref<1x8x32xf32, #tpu.memory_space<vmem>>, vector<1x8x32xf32>
    %4 = vector.shape_cast %3 : vector<1x8x32xf32> to vector<8x32xf32>
    %5 = arith.truncf %4 : vector<8x32xf32> to vector<8x32xbf16>
    %c0_5 = arith.constant 0 : index
    %c0_6 = arith.constant 0 : index
    %c0_7 = arith.constant 0 : index
    %6 = vector.load %arg4[%c0_5, %c0_6, %c0_7] : memref<1x1x8xf32, #tpu.memory_space<vmem>>, vector<1x1x8xf32>
    %7 = vector.shape_cast %6 : vector<1x1x8xf32> to vector<1x8xf32>
    %cst = arith.constant 0.000000e+00 : f32
    %8 = vector.broadcast %cst : f32 to vector<1x8xf32>
    %9 = arith.cmpf oeq, %7, %8 : vector<1x8xf32>
    %cst_8 = arith.constant -1.000000e+10 : f32
    %cst_9 = arith.constant 0.000000e+00 : f32
    %10 = vector.broadcast %cst_8 : f32 to vector<1x8xf32>
    %11 = vector.broadcast %cst_9 : f32 to vector<1x8xf32>
    %12 = arith.select %9, %10, %11 : vector<1x8xi1>, vector<1x8xf32>
    %c0_10 = arith.constant 0 : index
    %c0_11 = arith.constant 0 : index
    %13 = vector.load %arg5[%c0_10, %c0_11] : memref<32x32xbf16, #tpu.memory_space<vmem>>, vector<32x32xbf16>
    %cst_12 = arith.constant dense<0.000000e+00> : vector<8x32xf32>
    %14 = tpu.matmul %2, %13, %cst_12 {dimension_numbers = #tpu.dot_dimension_numbers<[1], [0], [0], [1], [0, 0, 1, 1], [], []>} : vector<8x32xbf16>, vector<32x32xbf16>, vector<8x32xf32> -> vector<8x32xf32>
    %c0_13 = arith.constant 0 : index
    %c0_14 = arith.constant 0 : index
    %15 = vector.load %arg6[%c0_13, %c0_14] : memref<1x32xf32, #tpu.memory_space<vmem>>, vector<1x32xf32>
    %16 = vector.broadcast %15 : vector<1x32xf32> to vector<8x32xf32>
    %17 = arith.addf %14, %16 : vector<8x32xf32>
    %c0_15 = arith.constant 0 : index
    %c0_16 = arith.constant 0 : index
    %18 = vector.load %arg7[%c0_15, %c0_16] : memref<32x32xbf16, #tpu.memory_space<vmem>>, vector<32x32xbf16>
    %cst_17 = arith.constant dense<0.000000e+00> : vector<8x32xf32>
    %19 = tpu.matmul %5, %18, %cst_17 {dimension_numbers = #tpu.dot_dimension_numbers<[1], [0], [0], [1], [0, 0, 1, 1], [], []>} : vector<8x32xbf16>, vector<32x32xbf16>, vector<8x32xf32> -> vector<8x32xf32>
    %c0_18 = arith.constant 0 : index
    %c0_19 = arith.constant 0 : index
    %20 = vector.load %arg8[%c0_18, %c0_19] : memref<1x32xf32, #tpu.memory_space<vmem>>, vector<1x32xf32>
    %21 = vector.broadcast %20 : vector<1x32xf32> to vector<8x32xf32>
    %22 = arith.addf %19, %21 : vector<8x32xf32>
    %c0_20 = arith.constant 0 : index
    %c0_21 = arith.constant 0 : index
    %23 = vector.load %arg9[%c0_20, %c0_21] : memref<32x32xbf16, #tpu.memory_space<vmem>>, vector<32x32xbf16>
    %cst_22 = arith.constant dense<0.000000e+00> : vector<8x32xf32>
    %24 = tpu.matmul %5, %23, %cst_22 {dimension_numbers = #tpu.dot_dimension_numbers<[1], [0], [0], [1], [0, 0, 1, 1], [], []>} : vector<8x32xbf16>, vector<32x32xbf16>, vector<8x32xf32> -> vector<8x32xf32>
    %c0_23 = arith.constant 0 : index
    %c0_24 = arith.constant 0 : index
    %25 = vector.load %arg10[%c0_23, %c0_24] : memref<1x32xf32, #tpu.memory_space<vmem>>, vector<1x32xf32>
    %26 = vector.broadcast %25 : vector<1x32xf32> to vector<8x32xf32>
    %27 = arith.addf %24, %26 : vector<8x32xf32>
    %cst_25 = arith.constant 0.353553385 : f32
    %28 = vector.broadcast %cst_25 : f32 to vector<8x32xf32>
    %29 = arith.mulf %17, %28 : vector<8x32xf32>
    %30 = arith.truncf %29 : vector<8x32xf32> to vector<8x32xbf16>
    %31 = arith.truncf %22 : vector<8x32xf32> to vector<8x32xbf16>
    %32 = tpu.transpose %31, [1, 0] : vector<8x32xbf16> -> vector<32x8xbf16>
    %33 = arith.truncf %27 : vector<8x32xf32> to vector<8x32xbf16>
    %34 = vector.extract_strided_slice %30 {offsets = [0, 0], sizes = [8, 8], strides = [1, 1]} : vector<8x32xbf16> to vector<8x8xbf16>
    %35 = vector.extract_strided_slice %32 {offsets = [0, 0], sizes = [8, 8], strides = [1, 1]} : vector<32x8xbf16> to vector<8x8xbf16>
    %cst_26 = arith.constant dense<0.000000e+00> : vector<8x8xf32>
    %36 = tpu.matmul %34, %35, %cst_26 {dimension_numbers = #tpu.dot_dimension_numbers<[1], [0], [0], [1], [0, 0, 1, 1], [], []>} : vector<8x8xbf16>, vector<8x8xbf16>, vector<8x8xf32> -> vector<8x8xf32>
    %37 = vector.broadcast %12 : vector<1x8xf32> to vector<8x8xf32>
    %38 = arith.addf %36, %37 : vector<8x8xf32>
    %cst_27 = arith.constant dense<0xFF800000> : vector<8xf32>
    %39 = vector.multi_reduction <maximumf>, %38, %cst_27 [1] : vector<8x8xf32> to vector<8xf32>
    %40 = vector.shape_cast %39 : vector<8xf32> to vector<8x1xf32>
    %41 = vector.broadcast %40 : vector<8x1xf32> to vector<8x8xf32>
    %42 = arith.subf %38, %41 : vector<8x8xf32>
    %43 = math.exp %42 : vector<8x8xf32>
    %cst_28 = arith.constant dense<0.000000e+00> : vector<8xf32>
    %44 = vector.multi_reduction <add>, %43, %cst_28 [1] : vector<8x8xf32> to vector<8xf32>
    %45 = vector.shape_cast %44 : vector<8xf32> to vector<8x1xf32>
    %46 = tpu.reciprocal %45 {approx = true} : vector<8x1xf32> -> vector<8x1xf32>
    %47 = vector.broadcast %46 : vector<8x1xf32> to vector<8x8xf32>
    %48 = arith.mulf %43, %47 : vector<8x8xf32>
    %49 = arith.truncf %48 : vector<8x8xf32> to vector<8x8xbf16>
    %50 = vector.extract_strided_slice %33 {offsets = [0, 0], sizes = [8, 8], strides = [1, 1]} : vector<8x32xbf16> to vector<8x8xbf16>
    %cst_29 = arith.constant dense<0.000000e+00> : vector<8x8xf32>
    %51 = tpu.matmul %49, %50, %cst_29 {dimension_numbers = #tpu.dot_dimension_numbers<[1], [0], [0], [1], [0, 0, 1, 1], [], []>} : vector<8x8xbf16>, vector<8x8xbf16>, vector<8x8xf32> -> vector<8x8xf32>
    %c0_30 = arith.constant 0 : index
    %c0_31 = arith.constant 0 : index
    %52 = vector.load %arg22[%c0_30, %c0_31] : memref<8x32xf32, #tpu.memory_space<vmem>>, vector<8x8xf32>
    tpu.vector_store %arg22[%c0_30, %c0_31], %51 {strides = array<i32>} : memref<8x32xf32, #tpu.memory_space<vmem>>, vector<8x8xf32>,
    %53 = vector.extract_strided_slice %30 {offsets = [0, 8], sizes = [8, 8], strides = [1, 1]} : vector<8x32xbf16> to vector<8x8xbf16>
    %54 = vector.extract_strided_slice %32 {offsets = [8, 0], sizes = [8, 8], strides = [1, 1]} : vector<32x8xbf16> to vector<8x8xbf16>
    %cst_32 = arith.constant dense<0.000000e+00> : vector<8x8xf32>
    %55 = tpu.matmul %53, %54, %cst_32 {dimension_numbers = #tpu.dot_dimension_numbers<[1], [0], [0], [1], [0, 0, 1, 1], [], []>} : vector<8x8xbf16>, vector<8x8xbf16>, vector<8x8xf32> -> vector<8x8xf32>
    %56 = vector.broadcast %12 : vector<1x8xf32> to vector<8x8xf32>
    %57 = arith.addf %55, %56 : vector<8x8xf32>
    %cst_33 = arith.constant dense<0xFF800000> : vector<8xf32>
    %58 = vector.multi_reduction <maximumf>, %57, %cst_33 [1] : vector<8x8xf32> to vector<8xf32>
    %59 = vector.shape_cast %58 : vector<8xf32> to vector<8x1xf32>
    %60 = vector.broadcast %59 : vector<8x1xf32> to vector<8x8xf32>
    %61 = arith.subf %57, %60 : vector<8x8xf32>
    %62 = math.exp %61 : vector<8x8xf32>
    %cst_34 = arith.constant dense<0.000000e+00> : vector<8xf32>
    %63 = vector.multi_reduction <add>, %62, %cst_34 [1] : vector<8x8xf32> to vector<8xf32>
    %64 = vector.shape_cast %63 : vector<8xf32> to vector<8x1xf32>
    %65 = tpu.reciprocal %64 {approx = true} : vector<8x1xf32> -> vector<8x1xf32>
    %66 = vector.broadcast %65 : vector<8x1xf32> to vector<8x8xf32>
    %67 = arith.mulf %62, %66 : vector<8x8xf32>
    %68 = arith.truncf %67 : vector<8x8xf32> to vector<8x8xbf16>
    %69 = vector.extract_strided_slice %33 {offsets = [0, 8], sizes = [8, 8], strides = [1, 1]} : vector<8x32xbf16> to vector<8x8xbf16>
    %cst_35 = arith.constant dense<0.000000e+00> : vector<8x8xf32>
    %70 = tpu.matmul %68, %69, %cst_35 {dimension_numbers = #tpu.dot_dimension_numbers<[1], [0], [0], [1], [0, 0, 1, 1], [], []>} : vector<8x8xbf16>, vector<8x8xbf16>, vector<8x8xf32> -> vector<8x8xf32>
    %c0_36 = arith.constant 0 : index
    %c8 = arith.constant 8 : index
    %71 = vector.load %arg22[%c0_36, %c8] : memref<8x32xf32, #tpu.memory_space<vmem>>, vector<8x8xf32>
    tpu.vector_store %arg22[%c0_36, %c8], %70 {strides = array<i32>} : memref<8x32xf32, #tpu.memory_space<vmem>>, vector<8x8xf32>,
    %72 = vector.extract_strided_slice %30 {offsets = [0, 16], sizes = [8, 8], strides = [1, 1]} : vector<8x32xbf16> to vector<8x8xbf16>
    %73 = vector.extract_strided_slice %32 {offsets = [16, 0], sizes = [8, 8], strides = [1, 1]} : vector<32x8xbf16> to vector<8x8xbf16>
    %cst_37 = arith.constant dense<0.000000e+00> : vector<8x8xf32>
    %74 = tpu.matmul %72, %73, %cst_37 {dimension_numbers = #tpu.dot_dimension_numbers<[1], [0], [0], [1], [0, 0, 1, 1], [], []>} : vector<8x8xbf16>, vector<8x8xbf16>, vector<8x8xf32> -> vector<8x8xf32>
    %75 = vector.broadcast %12 : vector<1x8xf32> to vector<8x8xf32>
    %76 = arith.addf %74, %75 : vector<8x8xf32>
    %cst_38 = arith.constant dense<0xFF800000> : vector<8xf32>
    %77 = vector.multi_reduction <maximumf>, %76, %cst_38 [1] : vector<8x8xf32> to vector<8xf32>
    %78 = vector.shape_cast %77 : vector<8xf32> to vector<8x1xf32>
    %79 = vector.broadcast %78 : vector<8x1xf32> to vector<8x8xf32>
    %80 = arith.subf %76, %79 : vector<8x8xf32>
    %81 = math.exp %80 : vector<8x8xf32>
    %cst_39 = arith.constant dense<0.000000e+00> : vector<8xf32>
    %82 = vector.multi_reduction <add>, %81, %cst_39 [1] : vector<8x8xf32> to vector<8xf32>
    %83 = vector.shape_cast %82 : vector<8xf32> to vector<8x1xf32>
    %84 = tpu.reciprocal %83 {approx = true} : vector<8x1xf32> -> vector<8x1xf32>
    %85 = vector.broadcast %84 : vector<8x1xf32> to vector<8x8xf32>
    %86 = arith.mulf %81, %85 : vector<8x8xf32>
    %87 = arith.truncf %86 : vector<8x8xf32> to vector<8x8xbf16>
    %88 = vector.extract_strided_slice %33 {offsets = [0, 16], sizes = [8, 8], strides = [1, 1]} : vector<8x32xbf16> to vector<8x8xbf16>
    %cst_40 = arith.constant dense<0.000000e+00> : vector<8x8xf32>
    %89 = tpu.matmul %87, %88, %cst_40 {dimension_numbers = #tpu.dot_dimension_numbers<[1], [0], [0], [1], [0, 0, 1, 1], [], []>} : vector<8x8xbf16>, vector<8x8xbf16>, vector<8x8xf32> -> vector<8x8xf32>
    %c0_41 = arith.constant 0 : index
    %c16 = arith.constant 16 : index
    %90 = vector.load %arg22[%c0_41, %c16] : memref<8x32xf32, #tpu.memory_space<vmem>>, vector<8x8xf32>
    tpu.vector_store %arg22[%c0_41, %c16], %89 {strides = array<i32>} : memref<8x32xf32, #tpu.memory_space<vmem>>, vector<8x8xf32>,
    %91 = vector.extract_strided_slice %30 {offsets = [0, 24], sizes = [8, 8], strides = [1, 1]} : vector<8x32xbf16> to vector<8x8xbf16>
    %92 = vector.extract_strided_slice %32 {offsets = [24, 0], sizes = [8, 8], strides = [1, 1]} : vector<32x8xbf16> to vector<8x8xbf16>
    %cst_42 = arith.constant dense<0.000000e+00> : vector<8x8xf32>
    %93 = tpu.matmul %91, %92, %cst_42 {dimension_numbers = #tpu.dot_dimension_numbers<[1], [0], [0], [1], [0, 0, 1, 1], [], []>} : vector<8x8xbf16>, vector<8x8xbf16>, vector<8x8xf32> -> vector<8x8xf32>
    %94 = vector.broadcast %12 : vector<1x8xf32> to vector<8x8xf32>
    %95 = arith.addf %93, %94 : vector<8x8xf32>
    %cst_43 = arith.constant dense<0xFF800000> : vector<8xf32>
    %96 = vector.multi_reduction <maximumf>, %95, %cst_43 [1] : vector<8x8xf32> to vector<8xf32>
    %97 = vector.shape_cast %96 : vector<8xf32> to vector<8x1xf32>
    %98 = vector.broadcast %97 : vector<8x1xf32> to vector<8x8xf32>
    %99 = arith.subf %95, %98 : vector<8x8xf32>
    %100 = math.exp %99 : vector<8x8xf32>
    %cst_44 = arith.constant dense<0.000000e+00> : vector<8xf32>
    %101 = vector.multi_reduction <add>, %100, %cst_44 [1] : vector<8x8xf32> to vector<8xf32>
    %102 = vector.shape_cast %101 : vector<8xf32> to vector<8x1xf32>
    %103 = tpu.reciprocal %102 {approx = true} : vector<8x1xf32> -> vector<8x1xf32>
    %104 = vector.broadcast %103 : vector<8x1xf32> to vector<8x8xf32>
    %105 = arith.mulf %100, %104 : vector<8x8xf32>
    %106 = arith.truncf %105 : vector<8x8xf32> to vector<8x8xbf16>
    %107 = vector.extract_strided_slice %33 {offsets = [0, 24], sizes = [8, 8], strides = [1, 1]} : vector<8x32xbf16> to vector<8x8xbf16>
    %cst_45 = arith.constant dense<0.000000e+00> : vector<8x8xf32>
    %108 = tpu.matmul %106, %107, %cst_45 {dimension_numbers = #tpu.dot_dimension_numbers<[1], [0], [0], [1], [0, 0, 1, 1], [], []>} : vector<8x8xbf16>, vector<8x8xbf16>, vector<8x8xf32> -> vector<8x8xf32>
    %c0_46 = arith.constant 0 : index
    %c24 = arith.constant 24 : index
    %109 = vector.load %arg22[%c0_46, %c24] : memref<8x32xf32, #tpu.memory_space<vmem>>, vector<8x8xf32>
    tpu.vector_store %arg22[%c0_46, %c24], %108 {strides = array<i32>} : memref<8x32xf32, #tpu.memory_space<vmem>>, vector<8x8xf32>,
    %c0_47 = arith.constant 0 : index
    %c0_48 = arith.constant 0 : index
    %110 = vector.load %arg22[%c0_47, %c0_48] : memref<8x32xf32, #tpu.memory_space<vmem>>, vector<8x32xf32>
    %111 = arith.truncf %110 : vector<8x32xf32> to vector<8x32xbf16>
    %c0_49 = arith.constant 0 : index
    %c0_50 = arith.constant 0 : index
    %112 = vector.load %arg11[%c0_49, %c0_50] : memref<32x32xbf16, #tpu.memory_space<vmem>>, vector<32x32xbf16>
    %cst_51 = arith.constant dense<0.000000e+00> : vector<8x32xf32>
    %113 = tpu.matmul %111, %112, %cst_51 {dimension_numbers = #tpu.dot_dimension_numbers<[1], [0], [0], [1], [0, 0, 1, 1], [], []>} : vector<8x32xbf16>, vector<32x32xbf16>, vector<8x32xf32> -> vector<8x32xf32>
    %c0_52 = arith.constant 0 : index
    %c0_53 = arith.constant 0 : index
    %114 = vector.load %arg12[%c0_52, %c0_53] : memref<1x32xf32, #tpu.memory_space<vmem>>, vector<1x32xf32>
    %115 = vector.broadcast %114 : vector<1x32xf32> to vector<8x32xf32>
    %116 = arith.addf %113, %115 : vector<8x32xf32>
    %117 = arith.addf %1, %116 : vector<8x32xf32>
    %c0_54 = arith.constant 0 : index
    %c0_55 = arith.constant 0 : index
    %118 = vector.load %arg13[%c0_54, %c0_55] : memref<1x32xf32, #tpu.memory_space<vmem>>, vector<1x32xf32>
    %c0_56 = arith.constant 0 : index
    %c0_57 = arith.constant 0 : index
    %119 = vector.load %arg14[%c0_56, %c0_57] : memref<1x32xf32, #tpu.memory_space<vmem>>, vector<1x32xf32>
    %cst_58 = arith.constant dense<0.000000e+00> : vector<8xf32>
    %120 = vector.multi_reduction <add>, %117, %cst_58 [1] : vector<8x32xf32> to vector<8xf32>
    %121 = vector.shape_cast %120 : vector<8xf32> to vector<8x1xf32>
    %cst_59 = arith.constant 3.200000e+01 : f32
    %122 = vector.broadcast %cst_59 : f32 to vector<8x1xf32>
    %123 = arith.divf %121, %122 : vector<8x1xf32>
    %124 = vector.broadcast %123 : vector<8x1xf32> to vector<8x32xf32>
    %125 = arith.subf %117, %124 : vector<8x32xf32>
    %126 = arith.mulf %125, %125 : vector<8x32xf32>
    %cst_60 = arith.constant dense<0.000000e+00> : vector<8xf32>
    %127 = vector.multi_reduction <add>, %126, %cst_60 [1] : vector<8x32xf32> to vector<8xf32>
    %128 = vector.shape_cast %127 : vector<8xf32> to vector<8x1xf32>
    %cst_61 = arith.constant 3.200000e+01 : f32
    %129 = vector.broadcast %cst_61 : f32 to vector<8x1xf32>
    %130 = arith.divf %128, %129 : vector<8x1xf32>
    %cst_62 = arith.constant 9.99999974E-6 : f32
    %131 = vector.broadcast %cst_62 : f32 to vector<8x1xf32>
    %132 = arith.addf %130, %131 : vector<8x1xf32>
    %133 = math.rsqrt %132 : vector<8x1xf32>
    %134 = vector.broadcast %123 : vector<8x1xf32> to vector<8x32xf32>
    %135 = arith.subf %117, %134 : vector<8x32xf32>
    %136 = vector.broadcast %133 : vector<8x1xf32> to vector<8x32xf32>
    %137 = arith.mulf %135, %136 : vector<8x32xf32>
    %138 = vector.broadcast %118 : vector<1x32xf32> to vector<8x32xf32>
    %139 = arith.mulf %137, %138 : vector<8x32xf32>
    %140 = vector.broadcast %119 : vector<1x32xf32> to vector<8x32xf32>
    %141 = arith.addf %139, %140 : vector<8x32xf32>
    %142 = arith.truncf %141 : vector<8x32xf32> to vector<8x32xbf16>
    %c0_63 = arith.constant 0 : index
    %c0_64 = arith.constant 0 : index
    %143 = vector.load %arg15[%c0_63, %c0_64] : memref<32x64xbf16, #tpu.memory_space<vmem>>, vector<32x64xbf16>
    %cst_65 = arith.constant dense<0.000000e+00> : vector<8x64xf32>
    %144 = tpu.matmul %142, %143, %cst_65 {dimension_numbers = #tpu.dot_dimension_numbers<[1], [0], [0], [1], [0, 0, 1, 1], [], []>} : vector<8x32xbf16>, vector<32x64xbf16>, vector<8x64xf32> -> vector<8x64xf32>
    %c0_66 = arith.constant 0 : index
    %c0_67 = arith.constant 0 : index
    %145 = vector.load %arg16[%c0_66, %c0_67] : memref<1x64xf32, #tpu.memory_space<vmem>>, vector<1x64xf32>
    %146 = vector.broadcast %145 : vector<1x64xf32> to vector<8x64xf32>
    %147 = arith.addf %144, %146 : vector<8x64xf32>
    %cst_68 = arith.constant 0.000000e+00 : f32
    %148 = vector.broadcast %cst_68 : f32 to vector<8x64xf32>
    %149 = arith.maximumf %147, %148 : vector<8x64xf32>
    %150 = arith.truncf %149 : vector<8x64xf32> to vector<8x64xbf16>
    %c0_69 = arith.constant 0 : index
    %c0_70 = arith.constant 0 : index
    %151 = vector.load %arg17[%c0_69, %c0_70] : memref<64x32xbf16, #tpu.memory_space<vmem>>, vector<64x32xbf16>
    %cst_71 = arith.constant dense<0.000000e+00> : vector<8x32xf32>
    %152 = tpu.matmul %150, %151, %cst_71 {dimension_numbers = #tpu.dot_dimension_numbers<[1], [0], [0], [1], [0, 0, 1, 1], [], []>} : vector<8x64xbf16>, vector<64x32xbf16>, vector<8x32xf32> -> vector<8x32xf32>
    %c0_72 = arith.constant 0 : index
    %c0_73 = arith.constant 0 : index
    %153 = vector.load %arg18[%c0_72, %c0_73] : memref<1x32xf32, #tpu.memory_space<vmem>>, vector<1x32xf32>
    %154 = vector.broadcast %153 : vector<1x32xf32> to vector<8x32xf32>
    %155 = arith.addf %152, %154 : vector<8x32xf32>
    %156 = arith.addf %141, %155 : vector<8x32xf32>
    %c0_74 = arith.constant 0 : index
    %c0_75 = arith.constant 0 : index
    %157 = vector.load %arg19[%c0_74, %c0_75] : memref<1x32xf32, #tpu.memory_space<vmem>>, vector<1x32xf32>
    %c0_76 = arith.constant 0 : index
    %c0_77 = arith.constant 0 : index
    %158 = vector.load %arg20[%c0_76, %c0_77] : memref<1x32xf32, #tpu.memory_space<vmem>>, vector<1x32xf32>
    %cst_78 = arith.constant dense<0.000000e+00> : vector<8xf32>
    %159 = vector.multi_reduction <add>, %156, %cst_78 [1] : vector<8x32xf32> to vector<8xf32>
    %160 = vector.shape_cast %159 : vector<8xf32> to vector<8x1xf32>
    %cst_79 = arith.constant 3.200000e+01 : f32
    %161 = vector.broadcast %cst_79 : f32 to vector<8x1xf32>
    %162 = arith.divf %160, %161 : vector<8x1xf32>
    %163 = vector.broadcast %162 : vector<8x1xf32> to vector<8x32xf32>
    %164 = arith.subf %156, %163 : vector<8x32xf32>
    %165 = arith.mulf %164, %164 : vector<8x32xf32>
    %cst_80 = arith.constant dense<0.000000e+00> : vector<8xf32>
    %166 = vector.multi_reduction <add>, %165, %cst_80 [1] : vector<8x32xf32> to vector<8xf32>
    %167 = vector.shape_cast %166 : vector<8xf32> to vector<8x1xf32>
    %cst_81 = arith.constant 3.200000e+01 : f32
    %168 = vector.broadcast %cst_81 : f32 to vector<8x1xf32>
    %169 = arith.divf %167, %168 : vector<8x1xf32>
    %cst_82 = arith.constant 9.99999974E-6 : f32
    %170 = vector.broadcast %cst_82 : f32 to vector<8x1xf32>
    %171 = arith.addf %169, %170 : vector<8x1xf32>
    %172 = math.rsqrt %171 : vector<8x1xf32>
    %173 = vector.broadcast %162 : vector<8x1xf32> to vector<8x32xf32>
    %174 = arith.subf %156, %173 : vector<8x32xf32>
    %175 = vector.broadcast %172 : vector<8x1xf32> to vector<8x32xf32>
    %176 = arith.mulf %174, %175 : vector<8x32xf32>
    %177 = vector.broadcast %157 : vector<1x32xf32> to vector<8x32xf32>
    %178 = arith.mulf %176, %177 : vector<8x32xf32>
    %179 = vector.broadcast %158 : vector<1x32xf32> to vector<8x32xf32>
    %180 = arith.addf %178, %179 : vector<8x32xf32>
    %c0_83 = arith.constant 0 : index
    %c0_84 = arith.constant 0 : index
    %c0_85 = arith.constant 0 : index
    %181 = vector.load %arg21[%c0_83, %c0_84, %c0_85] : memref<1x8x32xf32, #tpu.memory_space<vmem>>, vector<1x8x32xf32>
    %182 = vector.shape_cast %181 : vector<1x8x32xf32> to vector<8x32xf32>
    %183 = vector.shape_cast %180 : vector<8x32xf32> to vector<1x8x32xf32>
    tpu.vector_store %arg21[%c0_83, %c0_84, %c0_85], %183 {strides = array<i32>} : memref<1x8x32xf32, #tpu.memory_space<vmem>>, vector<1x8x32xf32>,
    return
  }
  func.func @transform_0(%arg0: i32, %arg1: i32) -> (i32, i32, i32) {
    %c0_i32 = arith.constant 0 : i32
    %c0_i32_0 = arith.constant 0 : i32
    return %arg0, %arg1, %c0_i32 : i32, i32, i32
  }
  func.func @transform_1(%arg0: i32, %arg1: i32) -> (i32, i32, i32) {
    %c0_i32 = arith.constant 0 : i32
    %c0_i32_0 = arith.constant 0 : i32
    %c0_i32_1 = arith.constant 0 : i32
    return %arg0, %c0_i32, %c0_i32_0 : i32, i32, i32
  }
  func.func @transform_2(%arg0: i32, %arg1: i32) -> (i32, i32, i32) {
    %c0_i32 = arith.constant 0 : i32
    %c0_i32_0 = arith.constant 0 : i32
    %c0_i32_1 = arith.constant 0 : i32
    return %arg0, %c0_i32, %c0_i32_0 : i32, i32, i32
  }
  func.func @transform_3(%arg0: i32, %arg1: i32) -> (i32, i32) {
    %c0_i32 = arith.constant 0 : i32
    %c0_i32_0 = arith.constant 0 : i32
    %c0_i32_1 = arith.constant 0 : i32
    return %c0_i32, %c0_i32_0 : i32, i32
  }
  func.func @transform_4(%arg0: i32, %arg1: i32) -> (i32, i32) {
    %c0_i32 = arith.constant 0 : i32
    %c0_i32_0 = arith.constant 0 : i32
    %c0_i32_1 = arith.constant 0 : i32
    return %c0_i32, %c0_i32_0 : i32, i32
  }
  func.func @transform_5(%arg0: i32, %arg1: i32) -> (i32, i32) {
    %c0_i32 = arith.constant 0 : i32
    %c0_i32_0 = arith.constant 0 : i32
    %c0_i32_1 = arith.constant 0 : i32
    return %c0_i32, %c0_i32_0 : i32, i32
  }
  func.func @transform_6(%arg0: i32, %arg1: i32) -> (i32, i32) {
    %c0_i32 = arith.constant 0 : i32
    %c0_i32_0 = arith.constant 0 : i32
    %c0_i32_1 = arith.constant 0 : i32
    return %c0_i32, %c0_i32_0 : i32, i32
  }
  func.func @transform_7(%arg0: i32, %arg1: i32) -> (i32, i32) {
    %c0_i32 = arith.constant 0 : i32
    %c0_i32_0 = arith.constant 0 : i32
    %c0_i32_1 = arith.constant 0 : i32
    return %c0_i32, %c0_i32_0 : i32, i32
  }
  func.func @transform_8(%arg0: i32, %arg1: i32) -> (i32, i32) {
    %c0_i32 = arith.constant 0 : i32
    %c0_i32_0 = arith.constant 0 : i32
    %c0_i32_1 = arith.constant 0 : i32
    return %c0_i32, %c0_i32_0 : i32, i32
  }
  func.func @transform_9(%arg0: i32, %arg1: i32) -> (i32, i32) {
    %c0_i32 = arith.constant 0 : i32
    %c0_i32_0 = arith.constant 0 : i32
    %c0_i32_1 = arith.constant 0 : i32
    return %c0_i32, %c0_i32_0 : i32, i32
  }
  func.func @transform_10(%arg0: i32, %arg1: i32) -> (i32, i32) {
    %c0_i32 = arith.constant 0 : i32
    %c0_i32_0 = arith.constant 0 : i32
    %c0_i32_1 = arith.constant 0 : i32
    return %c0_i32, %c0_i32_0 : i32, i32
  }
  func.func @transform_11(%arg0: i32, %arg1: i32) -> (i32, i32) {
    %c0_i32 = arith.constant 0 : i32
    %c0_i32_0 = arith.constant 0 : i32
    %c0_i32_1 = arith.constant 0 : i32
    return %c0_i32, %c0_i32_0 : i32, i32
  }
  func.func @transform_12(%arg0: i32, %arg1: i32) -> (i32, i32) {
    %c0_i32 = arith.constant 0 : i32
    %c0_i32_0 = arith.constant 0 : i32
    %c0_i32_1 = arith.constant 0 : i32
    return %c0_i32, %c0_i32_0 : i32, i32
  }
  func.func @transform_13(%arg0: i32, %arg1: i32) -> (i32, i32) {
    %c0_i32 = arith.constant 0 : i32
    %c0_i32_0 = arith.constant 0 : i32
    %c0_i32_1 = arith.constant 0 : i32
    return %c0_i32, %c0_i32_0 : i32, i32
  }
  func.func @transform_14(%arg0: i32, %arg1: i32) -> (i32, i32) {
    %c0_i32 = arith.constant 0 : i32
    %c0_i32_0 = arith.constant 0 : i32
    %c0_i32_1 = arith.constant 0 : i32
    return %c0_i32, %c0_i32_0 : i32, i32
  }
  func.func @transform_15(%arg0: i32, %arg1: i32) -> (i32, i32) {
    %c0_i32 = arith.constant 0 : i32
    %c0_i32_0 = arith.constant 0 : i32
    %c0_i32_1 = arith.constant 0 : i32
    return %c0_i32, %c0_i32_0 : i32, i32
  }
  func.func @transform_16(%arg0: i32, %arg1: i32) -> (i32, i32) {
    %c0_i32 = arith.constant 0 : i32
    %c0_i32_0 = arith.constant 0 : i32
    %c0_i32_1 = arith.constant 0 : i32
    return %c0_i32, %c0_i32_0 : i32, i32
  }
  func.func @transform_17(%arg0: i32, %arg1: i32) -> (i32, i32) {
    %c0_i32 = arith.constant 0 : i32
    %c0_i32_0 = arith.constant 0 : i32
    %c0_i32_1 = arith.constant 0 : i32
    return %c0_i32, %c0_i32_0 : i32, i32
  }
  func.func @transform_18(%arg0: i32, %arg1: i32) -> (i32, i32) {
    %c0_i32 = arith.constant 0 : i32
    %c0_i32_0 = arith.constant 0 : i32
    %c0_i32_1 = arith.constant 0 : i32
    return %c0_i32, %c0_i32_0 : i32, i32
  }
  func.func @transform_19(%arg0: i32, %arg1: i32) -> (i32, i32, i32) {
    %c0_i32 = arith.constant 0 : i32
    %c0_i32_0 = arith.constant 0 : i32
    return %arg0, %arg1, %c0_i32 : i32, i32, i32
  }
}

</mosaic_0001>

<llo_original>
// kernel: tpu_custom_call.1
$region0: #{tpu_custom_call.1}
  #allocation0 [shape = 'u32[]', space=smem, size = 0x4, offset = 0x4, fixed_abs, tag = 'smem constant byte address 0x4 - core index']
  #allocation1 [shape = 'u32[144,128]{1,0:T(1,128)}', space=vmem, size = 0x12000, scoped, tag = 'internal scratch']
  #allocation2 [shape = 'f32[8,32]{1,0:T(8,128)}', space=vmem, size = 0x1000, scoped, tag = 'scratch operand']
  %s0 = inlined_call_operand.vmem [shape: f32[2,8,32], index: 0, kind: input, shape index: {}]
  %s1 = inlined_call_operand.vmem [shape: f32[2,8,32], index: 1, kind: input, shape index: {}]
  %s2 = inlined_call_operand.hbm [shape: f32[2,1,8], index: 2, kind: input, shape index: {}]
  %s3 = inlined_call_operand.vmem [shape: bf16[32,32], index: 3, kind: input, shape index: {}]
  %s4 = inlined_call_operand.hbm [shape: f32[1,32], index: 4, kind: input, shape index: {}]
  %s5 = inlined_call_operand.hbm [shape: bf16[32,32], index: 5, kind: input, shape index: {}]
  %s6 = inlined_call_operand.hbm [shape: f32[1,32], index: 6, kind: input, shape index: {}]
  %s7 = inlined_call_operand.hbm [shape: bf16[32,32], index: 7, kind: input, shape index: {}]
  %s8 = inlined_call_operand.hbm [shape: f32[1,32], index: 8, kind: input, shape index: {}]
  %s9 = inlined_call_operand.vmem [shape: bf16[32,32], index: 9, kind: input, shape index: {}]
  %s10 = inlined_call_operand.vmem [shape: f32[1,32], index: 10, kind: input, shape index: {}]
  %s11 = inlined_call_operand.vmem [shape: f32[1,32], index: 11, kind: input, shape index: {}]
  %s12 = inlined_call_operand.vmem [shape: f32[1,32], index: 12, kind: input, shape index: {}]
  %s13 = inlined_call_operand.hbm [shape: bf16[32,64], index: 13, kind: input, shape index: {}]
  %s14 = inlined_call_operand.vmem [shape: f32[1,64], index: 14, kind: input, shape index: {}]
  %s15 = inlined_call_operand.vmem [shape: bf16[64,32], index: 15, kind: input, shape index: {}]
  %s16 = inlined_call_operand.vmem [shape: f32[1,32], index: 16, kind: input, shape index: {}]
  %s17 = inlined_call_operand.vmem [shape: f32[1,32], index: 17, kind: input, shape index: {}]
  %s18 = inlined_call_operand.vmem [shape: f32[1,32], index: 18, kind: input, shape index: {}]
  %s19 = inlined_call_operand.hbm [shape: f32[2,8,32], index: 19, kind: output, shape index: {}]
  %s20 = sld [smem:[#allocation0]]
  $region137: #{tpu_custom_call.1} parent=0
    _
  %s22 = ssub.s32 1, %s20
  %s23 = scalar_select 0, %s22, %s20
  $region1: #{tpu_custom_call.1} parent=0
    #allocation3 [shape = 'u8[1024]{0}', space=vmem, size = 0x400, scoped, tag = 'input window, operand 2']
    #allocation4 [shape = 's32[2]{0}', space=sflag, size = 0x8, scoped, tag = 'scoped memory for tpu_custom_call.1']
    #allocation5 [shape = 's32[2]{0}', space=sflag, size = 0x8, scoped, tag = 'scoped memory for tpu_custom_call.1']
    #allocation6 [shape = 'u8[512]{0}', space=vmem, size = 0x400, scoped, tag = 'input window, operand 4, single buffered']
    #allocation7 [shape = 's32[1]{0}', space=sflag, size = 0x4, scoped, tag = 'scoped memory for tpu_custom_call.1']
    #allocation8 [shape = 'u8[8192]{0}', space=vmem, size = 0x2000, scoped, tag = 'input window, operand 5, single buffered']
    #allocation9 [shape = 'u8[512]{0}', space=vmem, size = 0x400, scoped, tag = 'input window, operand 6, single buffered']
    #allocation10 [shape = 's32[1]{0}', space=sflag, size = 0x4, scoped, tag = 'scoped memory for tpu_custom_call.1']
    #allocation11 [shape = 'u8[8192]{0}', space=vmem, size = 0x2000, scoped, tag = 'input window, operand 7, single buffered']
    #allocation12 [shape = 'u8[512]{0}', space=vmem, size = 0x400, scoped, tag = 'input window, operand 8, single buffered']
    #allocation13 [shape = 's32[1]{0}', space=sflag, size = 0x4, scoped, tag = 'scoped memory for tpu_custom_call.1']
    #allocation14 [shape = 'u8[8192]{0}', space=vmem, size = 0x2000, scoped, tag = 'input window, operand 13, single buffered']
    #allocation15 [shape = 'u8[8192]{0}', space=vmem, size = 0x2000, scoped, tag = 'output window, operand 0']
    %24 = vsyncpa [#allocation4], 0
    %s25 = scalar_lea.sflag [#allocation4], 1
    %26 = vsyncpa %s25, 0
    %27 = vsyncpa [#allocation7], 0
    %28 = vsyncpa [#allocation10], 0
    %29 = vsyncpa [#allocation13], 0
    %30 = vsyncpa [#allocation5], 0
    %s31 = scalar_lea.sflag [#allocation5], 1
    %32 = vsyncpa %s31, 0
    loop: start=0, step=1, limit=4
    $region2: #{tpu_custom_call.1} parent=1 // loop_pre_header
      _
    $region3: #{tpu_custom_call.1} parent=1 // loop_header
      %s34 = sphi 0, %s38
      %p35 = scmp.ge.s32.totalorder %s34, 4
      %s41 = sphi 0, %s53
      %s42 = sphi 0, %s49
      %s43 = sphi 0, %s41
      %s44 = sphi 0, %s42
      %s45 = sphi 0, %s43
      %s46 = sphi 0, %s44
      %s58 = sphi 0, %s60
      %s61 = sphi 0, %s58
      %s62 = sphi 0, %s61
      %s78 = sphi 0, %s62
      %s84 = sphi 0, %s86
      %s87 = sphi 0, %s84
      %s88 = sphi 0, %s87
      %s104 = sphi 0, %s88
      %s110 = sphi 0, %s112
      %s113 = sphi 0, %s110
      %s114 = sphi 0, %s113
      %s130 = sphi 0, %s114
      %s134 = sphi 0, %s134
      %s136 = sphi 0, %s134
      %s137 = sphi 0, %s136
      %s151 = sphi 0, %s137
      %s155 = sphi 0, %s155
      %s157 = sphi 0, %s155
      %s158 = sphi 0, %s157
      %s172 = sphi 0, %s158
      %s176 = sphi 0, %s176
      %s178 = sphi 0, %s176
      %s179 = sphi 0, %s178
      %s193 = sphi 0, %s179
      %s197 = sphi 0, %s197
      %s199 = sphi 0, %s197
      %s200 = sphi 0, %s199
      %s214 = sphi 0, %s200
      %s218 = sphi 0, %s218
      %s220 = sphi 0, %s218
      %s221 = sphi 0, %s220
      %s235 = sphi 0, %s221
      %s239 = sphi 0, %s239
      %s241 = sphi 0, %s239
      %s242 = sphi 0, %s241
      %s256 = sphi 0, %s242
      %s260 = sphi 0, %s260
      %s262 = sphi 0, %s260
      %s263 = sphi 0, %s262
      %s277 = sphi 0, %s263
      %s281 = sphi 0, %s281
      %s283 = sphi 0, %s281
      %s284 = sphi 0, %s283
      %s298 = sphi 0, %s284
      %s302 = sphi 0, %s302
      %s304 = sphi 0, %s302
      %s305 = sphi 0, %s304
      %s319 = sphi 0, %s305
      %s323 = sphi 0, %s323
      %s325 = sphi 0, %s323
      %s326 = sphi 0, %s325
      %s340 = sphi 0, %s326
      %s344 = sphi 0, %s344
      %s346 = sphi 0, %s344
      %s347 = sphi 0, %s346
      %s361 = sphi 0, %s347
      %s365 = sphi 0, %s365
      %s367 = sphi 0, %s365
      %s368 = sphi 0, %s367
      %s382 = sphi 0, %s368
      %s386 = sphi 0, %s386
      %s388 = sphi 0, %s386
      %s389 = sphi 0, %s388
      %s403 = sphi 0, %s389
      %s407 = sphi 0, %s407
      %s409 = sphi 0, %s407
      %s410 = sphi 0, %s409
      %s424 = sphi 0, %s410
      %s428 = sphi 0, %s428
      %s430 = sphi 0, %s428
      %s431 = sphi 0, %s430
      %s445 = sphi 0, %s431
      %s449 = sphi 0, %s449
      %s451 = sphi 0, %s449
      %s452 = sphi 0, %s451
      %s466 = sphi 0, %s452
      %s474 = sphi 0, %s476
      %s477 = sphi 0, %s474
      %s478 = sphi 0, %s477
      %s494 = sphi 0, %s478
    $region4: #{tpu_custom_call.1} parent=1 // loop_header_branch
      %37 = sbr.rel (%p35) target = $region8
    $region5: #{tpu_custom_call.1} parent=1 // loop_body
      %s39 = ssub.s32 %s34, 1
      %s40 = ssub.s32 %s34, 2
      %s47 = sadd.s32 1, %s42
      %p48 = scmp.ge.s32.totalorder %s47, 1
      %s49 = scalar_select %p48, 0, %s47
      %s50 = sadd.s32 1, %s41
      %s51 = scalar_select %p48, %s50, %s41
      %p52 = scmp.ge.s32.totalorder %s51, 2
      %s53 = scalar_select %p52, 0, %s51
      %s54 = ssub.s32 %s41, %s53
      %s55 = ssub.s32 %s42, %s49
      %s56 = sor.u32 %s54, %s55
      %p57 = scmp.eq.s32.totalorder %s56, 0
      %s59 = sadd.s32 %s58, 1
      %s60 = scalar_select %p57, %s58, %s59
      %p63 = pneg %p57
      %p64 = scmp.eq.s32.totalorder %s34, 1
      %p65 = por %p63, %p64
      %p66 = scmp.ne.s32.totalorder %s58, %s61
      %p67 = scmp.eq.s32.totalorder %s34, 0
      %p68 = por %p66, %p67
      %p69 = scmp.ne.s32.totalorder %s58, %s61
      %p70 = scmp.eq.s32.totalorder %s39, 1
      %p71 = por %p69, %p70
      %p72 = scmp.ne.s32.totalorder %s61, %s62
      %p73 = scmp.eq.s32.totalorder %s39, 0
      %p74 = por %p72, %p73
      %p75 = scmp.ne.s32.totalorder %s61, %s62
      %p76 = scmp.eq.s32.totalorder %s40, 1
      %p77 = por %p75, %p76
      %p79 = scmp.ne.s32.totalorder %s62, %s78
      %p80 = scmp.eq.s32.totalorder %s40, 0
      %p81 = por %p79, %p80
      %s82 = ssub.s32 %s41, %s53
      %p83 = scmp.eq.s32.totalorder %s82, 0
      %s85 = sadd.s32 %s84, 1
      %s86 = scalar_select %p83, %s84, %s85
      %p89 = pneg %p83
      %p90 = scmp.eq.s32.totalorder %s34, 1
      %p91 = por %p89, %p90
      %p92 = scmp.ne.s32.totalorder %s84, %s87
      %p93 = scmp.eq.s32.totalorder %s34, 0
      %p94 = por %p92, %p93
      %p95 = scmp.ne.s32.totalorder %s84, %s87
      %p96 = scmp.eq.s32.totalorder %s39, 1
      %p97 = por %p95, %p96
      %p98 = scmp.ne.s32.totalorder %s87, %s88
      %p99 = scmp.eq.s32.totalorder %s39, 0
      %p100 = por %p98, %p99
      %p101 = scmp.ne.s32.totalorder %s87, %s88
      %p102 = scmp.eq.s32.totalorder %s40, 1
      %p103 = por %p101, %p102
      %p105 = scmp.ne.s32.totalorder %s88, %s104
      %p106 = scmp.eq.s32.totalorder %s40, 0
      %p107 = por %p105, %p106
      %s108 = ssub.s32 %s41, %s53
      %p109 = scmp.eq.s32.totalorder %s108, 0
      %s111 = sadd.s32 %s110, 1
      %s112 = scalar_select %p109, %s110, %s111
      %p115 = pneg %p109
      %p116 = scmp.eq.s32.totalorder %s34, 1
      %p117 = por %p115, %p116
      %p118 = scmp.ne.s32.totalorder %s110, %s113
      %p119 = scmp.eq.s32.totalorder %s34, 0
      %p120 = por %p118, %p119
      %p121 = scmp.ne.s32.totalorder %s110, %s113
      %p122 = scmp.eq.s32.totalorder %s39, 1
      %p123 = por %p121, %p122
      %p124 = scmp.ne.s32.totalorder %s113, %s114
      %p125 = scmp.eq.s32.totalorder %s39, 0
      %p126 = por %p124, %p125
      %p127 = scmp.ne.s32.totalorder %s113, %s114
      %p128 = scmp.eq.s32.totalorder %s40, 1
      %p129 = por %p127, %p128
      %p131 = scmp.ne.s32.totalorder %s114, %s130
      %p132 = scmp.eq.s32.totalorder %s40, 0
      %p133 = por %p131, %p132
      %s135 = sadd.s32 %s134, 1
      %p138 = scmp.eq.s32.totalorder %s34, 1
      %p139 = scmp.ne.s32.totalorder %s134, %s136
      %p140 = scmp.eq.s32.totalorder %s34, 0
      %p141 = por %p139, %p140
      %p142 = scmp.ne.s32.totalorder %s134, %s136
      %p143 = scmp.eq.s32.totalorder %s39, 1
      %p144 = por %p142, %p143
      %p145 = scmp.ne.s32.totalorder %s136, %s137
      %p146 = scmp.eq.s32.totalorder %s39, 0
      %p147 = por %p145, %p146
      %p148 = scmp.ne.s32.totalorder %s136, %s137
      %p149 = scmp.eq.s32.totalorder %s40, 1
      %p150 = por %p148, %p149
      %p152 = scmp.ne.s32.totalorder %s137, %s151
      %p153 = scmp.eq.s32.totalorder %s40, 0
      %p154 = por %p152, %p153
      %s156 = sadd.s32 %s155, 1
      %p159 = scmp.eq.s32.totalorder %s34, 1
      %p160 = scmp.ne.s32.totalorder %s155, %s157
      %p161 = scmp.eq.s32.totalorder %s34, 0
      %p162 = por %p160, %p161
      %p163 = scmp.ne.s32.totalorder %s155, %s157
      %p164 = scmp.eq.s32.totalorder %s39, 1
      %p165 = por %p163, %p164
      %p166 = scmp.ne.s32.totalorder %s157, %s158
      %p167 = scmp.eq.s32.totalorder %s39, 0
      %p168 = por %p166, %p167
      %p169 = scmp.ne.s32.totalorder %s157, %s158
      %p170 = scmp.eq.s32.totalorder %s40, 1
      %p171 = por %p169, %p170
      %p173 = scmp.ne.s32.totalorder %s158, %s172
      %p174 = scmp.eq.s32.totalorder %s40, 0
      %p175 = por %p173, %p174
      %s177 = sadd.s32 %s176, 1
      %p180 = scmp.eq.s32.totalorder %s34, 1
      %p181 = scmp.ne.s32.totalorder %s176, %s178
      %p182 = scmp.eq.s32.totalorder %s34, 0
      %p183 = por %p181, %p182
      %p184 = scmp.ne.s32.totalorder %s176, %s178
      %p185 = scmp.eq.s32.totalorder %s39, 1
      %p186 = por %p184, %p185
      %p187 = scmp.ne.s32.totalorder %s178, %s179
      %p188 = scmp.eq.s32.totalorder %s39, 0
      %p189 = por %p187, %p188
      %p190 = scmp.ne.s32.totalorder %s178, %s179
      %p191 = scmp.eq.s32.totalorder %s40, 1
      %p192 = por %p190, %p191
      %p194 = scmp.ne.s32.totalorder %s179, %s193
      %p195 = scmp.eq.s32.totalorder %s40, 0
      %p196 = por %p194, %p195
      %s198 = sadd.s32 %s197, 1
      %p201 = scmp.eq.s32.totalorder %s34, 1
      %p202 = scmp.ne.s32.totalorder %s197, %s199
      %p203 = scmp.eq.s32.totalorder %s34, 0
      %p204 = por %p202, %p203
      %p205 = scmp.ne.s32.totalorder %s197, %s199
      %p206 = scmp.eq.s32.totalorder %s39, 1
      %p207 = por %p205, %p206
      %p208 = scmp.ne.s32.totalorder %s199, %s200
      %p209 = scmp.eq.s32.totalorder %s39, 0
      %p210 = por %p208, %p209
      %p211 = scmp.ne.s32.totalorder %s199, %s200
      %p212 = scmp.eq.s32.totalorder %s40, 1
      %p213 = por %p211, %p212
      %p215 = scmp.ne.s32.totalorder %s200, %s214
      %p216 = scmp.eq.s32.totalorder %s40, 0
      %p217 = por %p215, %p216
      %s219 = sadd.s32 %s218, 1
      %p222 = scmp.eq.s32.totalorder %s34, 1
      %p223 = scmp.ne.s32.totalorder %s218, %s220
      %p224 = scmp.eq.s32.totalorder %s34, 0
      %p225 = por %p223, %p224
      %p226 = scmp.ne.s32.totalorder %s218, %s220
      %p227 = scmp.eq.s32.totalorder %s39, 1
      %p228 = por %p226, %p227
      %p229 = scmp.ne.s32.totalorder %s220, %s221
      %p230 = scmp.eq.s32.totalorder %s39, 0
      %p231 = por %p229, %p230
      %p232 = scmp.ne.s32.totalorder %s220, %s221
      %p233 = scmp.eq.s32.totalorder %s40, 1
      %p234 = por %p232, %p233
      %p236 = scmp.ne.s32.totalorder %s221, %s235
      %p237 = scmp.eq.s32.totalorder %s40, 0
      %p238 = por %p236, %p237
      %s240 = sadd.s32 %s239, 1
      %p243 = scmp.eq.s32.totalorder %s34, 1
      %p244 = scmp.ne.s32.totalorder %s239, %s241
      %p245 = scmp.eq.s32.totalorder %s34, 0
      %p246 = por %p244, %p245
      %p247 = scmp.ne.s32.totalorder %s239, %s241
      %p248 = scmp.eq.s32.totalorder %s39, 1
      %p249 = por %p247, %p248
      %p250 = scmp.ne.s32.totalorder %s241, %s242
      %p251 = scmp.eq.s32.totalorder %s39, 0
      %p252 = por %p250, %p251
      %p253 = scmp.ne.s32.totalorder %s241, %s242
      %p254 = scmp.eq.s32.totalorder %s40, 1
      %p255 = por %p253, %p254
      %p257 = scmp.ne.s32.totalorder %s242, %s256
      %p258 = scmp.eq.s32.totalorder %s40, 0
      %p259 = por %p257, %p258
      %s261 = sadd.s32 %s260, 1
      %p264 = scmp.eq.s32.totalorder %s34, 1
      %p265 = scmp.ne.s32.totalorder %s260, %s262
      %p266 = scmp.eq.s32.totalorder %s34, 0
      %p267 = por %p265, %p266
      %p268 = scmp.ne.s32.totalorder %s260, %s262
      %p269 = scmp.eq.s32.totalorder %s39, 1
      %p270 = por %p268, %p269
      %p271 = scmp.ne.s32.totalorder %s262, %s263
      %p272 = scmp.eq.s32.totalorder %s39, 0
      %p273 = por %p271, %p272
      %p274 = scmp.ne.s32.totalorder %s262, %s263
      %p275 = scmp.eq.s32.totalorder %s40, 1
      %p276 = por %p274, %p275
      %p278 = scmp.ne.s32.totalorder %s263, %s277
      %p279 = scmp.eq.s32.totalorder %s40, 0
      %p280 = por %p278, %p279
      %s282 = sadd.s32 %s281, 1
      %p285 = scmp.eq.s32.totalorder %s34, 1
      %p286 = scmp.ne.s32.totalorder %s281, %s283
      %p287 = scmp.eq.s32.totalorder %s34, 0
      %p288 = por %p286, %p287
      %p289 = scmp.ne.s32.totalorder %s281, %s283
      %p290 = scmp.eq.s32.totalorder %s39, 1
      %p291 = por %p289, %p290
      %p292 = scmp.ne.s32.totalorder %s283, %s284
      %p293 = scmp.eq.s32.totalorder %s39, 0
      %p294 = por %p292, %p293
      %p295 = scmp.ne.s32.totalorder %s283, %s284
      %p296 = scmp.eq.s32.totalorder %s40, 1
      %p297 = por %p295, %p296
      %p299 = scmp.ne.s32.totalorder %s284, %s298
      %p300 = scmp.eq.s32.totalorder %s40, 0
      %p301 = por %p299, %p300
      %s303 = sadd.s32 %s302, 1
      %p306 = scmp.eq.s32.totalorder %s34, 1
      %p307 = scmp.ne.s32.totalorder %s302, %s304
      %p308 = scmp.eq.s32.totalorder %s34, 0
      %p309 = por %p307, %p308
      %p310 = scmp.ne.s32.totalorder %s302, %s304
      %p311 = scmp.eq.s32.totalorder %s39, 1
      %p312 = por %p310, %p311
      %p313 = scmp.ne.s32.totalorder %s304, %s305
      %p314 = scmp.eq.s32.totalorder %s39, 0
      %p315 = por %p313, %p314
      %p316 = scmp.ne.s32.totalorder %s304, %s305
      %p317 = scmp.eq.s32.totalorder %s40, 1
      %p318 = por %p316, %p317
      %p320 = scmp.ne.s32.totalorder %s305, %s319
      %p321 = scmp.eq.s32.totalorder %s40, 0
      %p322 = por %p320, %p321
      %s324 = sadd.s32 %s323, 1
      %p327 = scmp.eq.s32.totalorder %s34, 1
      %p328 = scmp.ne.s32.totalorder %s323, %s325
      %p329 = scmp.eq.s32.totalorder %s34, 0
      %p330 = por %p328, %p329
      %p331 = scmp.ne.s32.totalorder %s323, %s325
      %p332 = scmp.eq.s32.totalorder %s39, 1
      %p333 = por %p331, %p332
      %p334 = scmp.ne.s32.totalorder %s325, %s326
      %p335 = scmp.eq.s32.totalorder %s39, 0
      %p336 = por %p334, %p335
      %p337 = scmp.ne.s32.totalorder %s325, %s326
      %p338 = scmp.eq.s32.totalorder %s40, 1
      %p339 = por %p337, %p338
      %p341 = scmp.ne.s32.totalorder %s326, %s340
      %p342 = scmp.eq.s32.totalorder %s40, 0
      %p343 = por %p341, %p342
      %s345 = sadd.s32 %s344, 1
      %p348 = scmp.eq.s32.totalorder %s34, 1
      %p349 = scmp.ne.s32.totalorder %s344, %s346
      %p350 = scmp.eq.s32.totalorder %s34, 0
      %p351 = por %p349, %p350
      %p352 = scmp.ne.s32.totalorder %s344, %s346
      %p353 = scmp.eq.s32.totalorder %s39, 1
      %p354 = por %p352, %p353
      %p355 = scmp.ne.s32.totalorder %s346, %s347
      %p356 = scmp.eq.s32.totalorder %s39, 0
      %p357 = por %p355, %p356
      %p358 = scmp.ne.s32.totalorder %s346, %s347
      %p359 = scmp.eq.s32.totalorder %s40, 1
      %p360 = por %p358, %p359
      %p362 = scmp.ne.s32.totalorder %s347, %s361
      %p363 = scmp.eq.s32.totalorder %s40, 0
      %p364 = por %p362, %p363
      %s366 = sadd.s32 %s365, 1
      %p369 = scmp.eq.s32.totalorder %s34, 1
      %p370 = scmp.ne.s32.totalorder %s365, %s367
      %p371 = scmp.eq.s32.totalorder %s34, 0
      %p372 = por %p370, %p371
      %p373 = scmp.ne.s32.totalorder %s365, %s367
      %p374 = scmp.eq.s32.totalorder %s39, 1
      %p375 = por %p373, %p374
      %p376 = scmp.ne.s32.totalorder %s367, %s368
      %p377 = scmp.eq.s32.totalorder %s39, 0
      %p378 = por %p376, %p377
      %p379 = scmp.ne.s32.totalorder %s367, %s368
      %p380 = scmp.eq.s32.totalorder %s40, 1
      %p381 = por %p379, %p380
      %p383 = scmp.ne.s32.totalorder %s368, %s382
      %p384 = scmp.eq.s32.totalorder %s40, 0
      %p385 = por %p383, %p384
      %s387 = sadd.s32 %s386, 1
      %p390 = scmp.eq.s32.totalorder %s34, 1
      %p391 = scmp.ne.s32.totalorder %s386, %s388
      %p392 = scmp.eq.s32.totalorder %s34, 0
      %p393 = por %p391, %p392
      %p394 = scmp.ne.s32.totalorder %s386, %s388
      %p395 = scmp.eq.s32.totalorder %s39, 1
      %p396 = por %p394, %p395
      %p397 = scmp.ne.s32.totalorder %s388, %s389
      %p398 = scmp.eq.s32.totalorder %s39, 0
      %p399 = por %p397, %p398
      %p400 = scmp.ne.s32.totalorder %s388, %s389
      %p401 = scmp.eq.s32.totalorder %s40, 1
      %p402 = por %p400, %p401
      %p404 = scmp.ne.s32.totalorder %s389, %s403
      %p405 = scmp.eq.s32.totalorder %s40, 0
      %p406 = por %p404, %p405
      %s408 = sadd.s32 %s407, 1
      %p411 = scmp.eq.s32.totalorder %s34, 1
      %p412 = scmp.ne.s32.totalorder %s407, %s409
      %p413 = scmp.eq.s32.totalorder %s34, 0
      %p414 = por %p412, %p413
      %p415 = scmp.ne.s32.totalorder %s407, %s409
      %p416 = scmp.eq.s32.totalorder %s39, 1
      %p417 = por %p415, %p416
      %p418 = scmp.ne.s32.totalorder %s409, %s410
      %p419 = scmp.eq.s32.totalorder %s39, 0
      %p420 = por %p418, %p419
      %p421 = scmp.ne.s32.totalorder %s409, %s410
      %p422 = scmp.eq.s32.totalorder %s40, 1
      %p423 = por %p421, %p422
      %p425 = scmp.ne.s32.totalorder %s410, %s424
      %p426 = scmp.eq.s32.totalorder %s40, 0
      %p427 = por %p425, %p426
      %s429 = sadd.s32 %s428, 1
      %p432 = scmp.eq.s32.totalorder %s34, 1
      %p433 = scmp.ne.s32.totalorder %s428, %s430
      %p434 = scmp.eq.s32.totalorder %s34, 0
      %p435 = por %p433, %p434
      %p436 = scmp.ne.s32.totalorder %s428, %s430
      %p437 = scmp.eq.s32.totalorder %s39, 1
      %p438 = por %p436, %p437
      %p439 = scmp.ne.s32.totalorder %s430, %s431
      %p440 = scmp.eq.s32.totalorder %s39, 0
      %p441 = por %p439, %p440
      %p442 = scmp.ne.s32.totalorder %s430, %s431
      %p443 = scmp.eq.s32.totalorder %s40, 1
      %p444 = por %p442, %p443
      %p446 = scmp.ne.s32.totalorder %s431, %s445
      %p447 = scmp.eq.s32.totalorder %s40, 0
      %p448 = por %p446, %p447
      %s450 = sadd.s32 %s449, 1
      %p453 = scmp.eq.s32.totalorder %s34, 1
      %p454 = scmp.ne.s32.totalorder %s449, %s451
      %p455 = scmp.eq.s32.totalorder %s34, 0
      %p456 = por %p454, %p455
      %p457 = scmp.ne.s32.totalorder %s449, %s451
      %p458 = scmp.eq.s32.totalorder %s39, 1
      %p459 = por %p457, %p458
      %p460 = scmp.ne.s32.totalorder %s451, %s452
      %p461 = scmp.eq.s32.totalorder %s39, 0
      %p462 = por %p460, %p461
      %p463 = scmp.ne.s32.totalorder %s451, %s452
      %p464 = scmp.eq.s32.totalorder %s40, 1
      %p465 = por %p463, %p464
      %p467 = scmp.ne.s32.totalorder %s452, %s466
      %p468 = scmp.eq.s32.totalorder %s40, 0
      %p469 = por %p467, %p468
      %s470 = ssub.s32 %s41, %s53
      %s471 = ssub.s32 %s42, %s49
      %s472 = sor.u32 %s470, %s471
      %p473 = scmp.eq.s32.totalorder %s472, 0
      %s475 = sadd.s32 %s474, 1
      %s476 = scalar_select %p473, %s474, %s475
      %p479 = pneg %p473
      %p480 = scmp.eq.s32.totalorder %s34, 1
      %p481 = por %p479, %p480
      %p482 = scmp.ne.s32.totalorder %s474, %s477
      %p483 = scmp.eq.s32.totalorder %s34, 0
      %p484 = por %p482, %p483
      %p485 = scmp.ne.s32.totalorder %s474, %s477
      %p486 = scmp.eq.s32.totalorder %s39, 1
      %p487 = por %p485, %p486
      %p488 = scmp.ne.s32.totalorder %s477, %s478
      %p489 = scmp.eq.s32.totalorder %s39, 0
      %p490 = por %p488, %p489
      %p491 = scmp.ne.s32.totalorder %s477, %s478
      %p492 = scmp.eq.s32.totalorder %s40, 1
      %p493 = por %p491, %p492
      %p495 = scmp.ne.s32.totalorder %s478, %s494
      %p496 = scmp.eq.s32.totalorder %s40, 0
      %p497 = por %p495, %p496
      %p498 = scmp.le.s32.totalorder 1, %s34
      %p499 = scmp.lt.s32.totalorder %s34, 3
      %p500 = pnand %p498, %p499
      %p501 = pneg %p500
      // Predicated region
      $region9: #{tpu_custom_call.1} parent=5 // pred_check
        _
      $region10: #{tpu_custom_call.1} parent=5 // pred_check_branch
        %503 = sbr.rel (%p500) target = $region12
      $region11: #{tpu_custom_call.1} parent=5 // pred_region
        %s504 = ssub.s32 %s34, 1
        // Predicated region
        $region13: #{tpu_custom_call.1} parent=11 // pred_check
          %p505 = pneg %p147
        $region14: #{tpu_custom_call.1} parent=11 // pred_check_branch
          %507 = sbr.rel (%p505) target = $region16
        $region15: #{tpu_custom_call.1} parent=11 // pred_region
          _
        $region16: #{tpu_custom_call.1} parent=11 // pred_fallthru
          _
        // Predicated region
        $region17: #{tpu_custom_call.1} parent=11 // pred_check
          %p508 = pneg %p168
        $region18: #{tpu_custom_call.1} parent=11 // pred_check_branch
          %510 = sbr.rel (%p508) target = $region20
        $region19: #{tpu_custom_call.1} parent=11 // pred_region
          %s512 = ssub.s32 16, 16
          %513 = vsyncadd [#allocation7], %s512
          %s515 = sshll.u32 [#allocation6], 4
          %s516 = int_to_ptr.vmem [resolvable:$true] %s515
          %518 = dma.hbm_to_vmem [thread:$0]  %s4, 16, %s516, [#allocation7]
        $region20: #{tpu_custom_call.1} parent=11 // pred_fallthru
          _
        // Predicated region
        $region21: #{tpu_custom_call.1} parent=11 // pred_check
          %p519 = pneg %p189
        $region22: #{tpu_custom_call.1} parent=11 // pred_check_branch
          %521 = sbr.rel (%p519) target = $region24
        $region23: #{tpu_custom_call.1} parent=11 // pred_region
          %s523 = ssub.s32 256, 256
          %524 = vsyncadd [#allocation7], %s523
          %s525 = sshll.u32 [#allocation8], 4
          %s526 = int_to_ptr.vmem [resolvable:$true] %s525
          %531 = dma.hbm_to_vmem [thread:$0]  %s5, 256, %s526, [#allocation7], 64, 64, 4
        $region24: #{tpu_custom_call.1} parent=11 // pred_fallthru
          _
        // Predicated region
        $region25: #{tpu_custom_call.1} parent=11 // pred_check
          %p532 = pneg %p210
        $region26: #{tpu_custom_call.1} parent=11 // pred_check_branch
          %534 = sbr.rel (%p532) target = $region28
        $region27: #{tpu_custom_call.1} parent=11 // pred_region
          %s536 = ssub.s32 16, 16
          %537 = vsyncadd [#allocation10], %s536
          %s539 = sshll.u32 [#allocation9], 4
          %s540 = int_to_ptr.vmem [resolvable:$true] %s539
          %542 = dma.hbm_to_vmem [thread:$0]  %s6, 16, %s540, [#allocation10]
        $region28: #{tpu_custom_call.1} parent=11 // pred_fallthru
          _
        // Predicated region
        $region29: #{tpu_custom_call.1} parent=11 // pred_check
          %p543 = pneg %p231
        $region30: #{tpu_custom_call.1} parent=11 // pred_check_branch
          %545 = sbr.rel (%p543) target = $region32
        $region31: #{tpu_custom_call.1} parent=11 // pred_region
          %s547 = ssub.s32 256, 256
          %548 = vsyncadd [#allocation10], %s547
          %s549 = sshll.u32 [#allocation11], 4
          %s550 = int_to_ptr.vmem [resolvable:$true] %s549
          %555 = dma.hbm_to_vmem [thread:$0]  %s7, 256, %s550, [#allocation10], 64, 64, 4
        $region32: #{tpu_custom_call.1} parent=11 // pred_fallthru
          _
        // Predicated region
        $region33: #{tpu_custom_call.1} parent=11 // pred_check
          %p556 = pneg %p252
        $region34: #{tpu_custom_call.1} parent=11 // pred_check_branch
          %558 = sbr.rel (%p556) target = $region36
        $region35: #{tpu_custom_call.1} parent=11 // pred_region
          %s560 = ssub.s32 16, 16
          %561 = vsyncadd [#allocation13], %s560
          %s563 = sshll.u32 [#allocation12], 4
          %s564 = int_to_ptr.vmem [resolvable:$true] %s563
          %566 = dma.hbm_to_vmem [thread:$0]  %s8, 16, %s564, [#allocation13]
        $region36: #{tpu_custom_call.1} parent=11 // pred_fallthru
          _
        // Predicated region
        $region37: #{tpu_custom_call.1} parent=11 // pred_check
          %p567 = pneg %p273
        $region38: #{tpu_custom_call.1} parent=11 // pred_check_branch
          %569 = sbr.rel (%p567) target = $region40
        $region39: #{tpu_custom_call.1} parent=11 // pred_region
          _
        $region40: #{tpu_custom_call.1} parent=11 // pred_fallthru
          _
        // Predicated region
        $region41: #{tpu_custom_call.1} parent=11 // pred_check
          %p570 = pneg %p294
        $region42: #{tpu_custom_call.1} parent=11 // pred_check_branch
          %572 = sbr.rel (%p570) target = $region44
        $region43: #{tpu_custom_call.1} parent=11 // pred_region
          _
        $region44: #{tpu_custom_call.1} parent=11 // pred_fallthru
          _
        // Predicated region
        $region45: #{tpu_custom_call.1} parent=11 // pred_check
          %p573 = pneg %p315
        $region46: #{tpu_custom_call.1} parent=11 // pred_check_branch
          %575 = sbr.rel (%p573) target = $region48
        $region47: #{tpu_custom_call.1} parent=11 // pred_region
          _
        $region48: #{tpu_custom_call.1} parent=11 // pred_fallthru
          _
        // Predicated region
        $region49: #{tpu_custom_call.1} parent=11 // pred_check
          %p576 = pneg %p336
        $region50: #{tpu_custom_call.1} parent=11 // pred_check_branch
          %578 = sbr.rel (%p576) target = $region52
        $region51: #{tpu_custom_call.1} parent=11 // pred_region
          _
        $region52: #{tpu_custom_call.1} parent=11 // pred_fallthru
          _
        // Predicated region
        $region53: #{tpu_custom_call.1} parent=11 // pred_check
          %p579 = pneg %p357
        $region54: #{tpu_custom_call.1} parent=11 // pred_check_branch
          %581 = sbr.rel (%p579) target = $region56
        $region55: #{tpu_custom_call.1} parent=11 // pred_region
          %s583 = ssub.s32 256, 256
          %584 = vsyncadd [#allocation13], %s583
          %s585 = sshll.u32 [#allocation14], 4
          %s586 = int_to_ptr.vmem [resolvable:$true] %s585
          %591 = dma.hbm_to_vmem [thread:$0]  %s13, 256, %s586, [#allocation13], 64, 64, 4
        $region56: #{tpu_custom_call.1} parent=11 // pred_fallthru
          _
        // Predicated region
        $region57: #{tpu_custom_call.1} parent=11 // pred_check
          %p592 = pneg %p378
        $region58: #{tpu_custom_call.1} parent=11 // pred_check_branch
          %594 = sbr.rel (%p592) target = $region60
        $region59: #{tpu_custom_call.1} parent=11 // pred_region
          _
        $region60: #{tpu_custom_call.1} parent=11 // pred_fallthru
          _
        // Predicated region
        $region61: #{tpu_custom_call.1} parent=11 // pred_check
          %p595 = pneg %p399
        $region62: #{tpu_custom_call.1} parent=11 // pred_check_branch
          %597 = sbr.rel (%p595) target = $region64
        $region63: #{tpu_custom_call.1} parent=11 // pred_region
          _
        $region64: #{tpu_custom_call.1} parent=11 // pred_fallthru
          _
        // Predicated region
        $region65: #{tpu_custom_call.1} parent=11 // pred_check
          %p598 = pneg %p420
        $region66: #{tpu_custom_call.1} parent=11 // pred_check_branch
          %600 = sbr.rel (%p598) target = $region68
        $region67: #{tpu_custom_call.1} parent=11 // pred_region
          _
        $region68: #{tpu_custom_call.1} parent=11 // pred_fallthru
          _
        // Predicated region
        $region69: #{tpu_custom_call.1} parent=11 // pred_check
          %p601 = pneg %p441
        $region70: #{tpu_custom_call.1} parent=11 // pred_check_branch
          %603 = sbr.rel (%p601) target = $region72
        $region71: #{tpu_custom_call.1} parent=11 // pred_region
          _
        $region72: #{tpu_custom_call.1} parent=11 // pred_fallthru
          _
        // Predicated region
        $region73: #{tpu_custom_call.1} parent=11 // pred_check
          %p604 = pneg %p462
        $region74: #{tpu_custom_call.1} parent=11 // pred_check_branch
          %606 = sbr.rel (%p604) target = $region76
        $region75: #{tpu_custom_call.1} parent=11 // pred_region
          _
        $region76: #{tpu_custom_call.1} parent=11 // pred_fallthru
          _
      $region12: #{tpu_custom_call.1} parent=5 // pred_fallthru
        _
      %p607 = scmp.lt.s32.totalorder %s34, 2
      // Predicated region
      $region77: #{tpu_custom_call.1} parent=5 // pred_check
        %p608 = pneg %p607
      $region78: #{tpu_custom_call.1} parent=5 // pred_check_branch
        %610 = sbr.rel (%p608) target = $region80
      $region79: #{tpu_custom_call.1} parent=5 // pred_region
        // Predicated region
        $region81: #{tpu_custom_call.1} parent=79 // pred_check
          %p611 = pneg %p68
        $region82: #{tpu_custom_call.1} parent=79 // pred_check_branch
          %613 = sbr.rel (%p611) target = $region84
        $region83: #{tpu_custom_call.1} parent=79 // pred_region
          %p614 = scmp.lt.s32.totalorder %s41, 1
          %s615 = scalar_select %p614, %s41, 1
          %p616 = scmp.lt.s32.totalorder %s42, 0
          %s617 = scalar_select %p616, %s42, 0
          %s618 = sadd.s32 %s617, %s615
          %s619 = smul.addr %s618, 8
          %s620 = scalar_lea.vmem %s0, %s619
        $region84: #{tpu_custom_call.1} parent=79 // pred_fallthru
          _
        // Predicated region
        $region85: #{tpu_custom_call.1} parent=79 // pred_check
          %p621 = pneg %p94
        $region86: #{tpu_custom_call.1} parent=79 // pred_check_branch
          %623 = sbr.rel (%p621) target = $region88
        $region87: #{tpu_custom_call.1} parent=79 // pred_region
          %p624 = scmp.lt.s32.totalorder %s41, 1
          %s625 = scalar_select %p624, %s41, 1
          %s626 = smul.addr %s625, 8
          %s627 = scalar_lea.vmem %s1, %s626
        $region88: #{tpu_custom_call.1} parent=79 // pred_fallthru
          _
        // Predicated region
        $region89: #{tpu_custom_call.1} parent=79 // pred_check
          %p628 = pneg %p120
        $region90: #{tpu_custom_call.1} parent=79 // pred_check_branch
          %630 = sbr.rel (%p628) target = $region92
        $region91: #{tpu_custom_call.1} parent=79 // pred_region
          %s631 = sand.u32 %s110, 1
          %s632 = scalar_lea.sflag [#allocation4], %s631
          %s633 = sand.u32 %s110, 1
          %s634 = scalar_lea.vmem [#allocation3], %s633
          %s636 = ssub.s32 16, 16
          %637 = vsyncadd %s632, %s636
          %s638 = smul.addr %s41, 16
          %s639 = scalar_lea.hbm %s2, %s638
          %s641 = sshll.u32 %s634, 4
          %s642 = int_to_ptr.vmem [resolvable:$true] %s641
          %644 = dma.hbm_to_vmem [thread:$0]  %s639, 16, %s642, %s632
        $region92: #{tpu_custom_call.1} parent=79 // pred_fallthru
          _
      $region80: #{tpu_custom_call.1} parent=5 // pred_fallthru
        _
      %p645 = scmp.le.s32.totalorder 1, %s34
      %p646 = scmp.lt.s32.totalorder %s34, 3
      %p647 = pnand %p645, %p646
      %p648 = pneg %p647
      // Predicated region
      $region93: #{tpu_custom_call.1} parent=5 // pred_check
        _
      $region94: #{tpu_custom_call.1} parent=5 // pred_check_branch
        %650 = sbr.rel (%p647) target = $region96
      $region95: #{tpu_custom_call.1} parent=5 // pred_region
        %s651 = ssub.s32 %s34, 1
        %s652 = sand.u32 %s113, 1
        %s653 = scalar_lea.sflag [#allocation4], %s652
        %s654 = sand.u32 %s113, 1
        %s655 = scalar_lea.vmem [#allocation3], %s654
        // Predicated region
        $region97: #{tpu_custom_call.1} parent=95 // pred_check
          %p656 = pneg %p126
        $region98: #{tpu_custom_call.1} parent=95 // pred_check_branch
          %658 = sbr.rel (%p656) target = $region100
        $region99: #{tpu_custom_call.1} parent=95 // pred_region
          %659 = dma.done %s653, 16
        $region100: #{tpu_custom_call.1} parent=95 // pred_fallthru
          _
        // Predicated region
        $region101: #{tpu_custom_call.1} parent=95 // pred_check
          %p660 = pneg %p168
        $region102: #{tpu_custom_call.1} parent=95 // pred_check_branch
          %662 = sbr.rel (%p660) target = $region104
        $region103: #{tpu_custom_call.1} parent=95 // pred_region
          %663 = dma.done [#allocation7], 16
        $region104: #{tpu_custom_call.1} parent=95 // pred_fallthru
          _
        // Predicated region
        $region105: #{tpu_custom_call.1} parent=95 // pred_check
          %p664 = pneg %p189
        $region106: #{tpu_custom_call.1} parent=95 // pred_check_branch
          %666 = sbr.rel (%p664) target = $region108
        $region107: #{tpu_custom_call.1} parent=95 // pred_region
          %667 = dma.done [#allocation7], 256
        $region108: #{tpu_custom_call.1} parent=95 // pred_fallthru
          _
        // Predicated region
        $region109: #{tpu_custom_call.1} parent=95 // pred_check
          %p668 = pneg %p210
        $region110: #{tpu_custom_call.1} parent=95 // pred_check_branch
          %670 = sbr.rel (%p668) target = $region112
        $region111: #{tpu_custom_call.1} parent=95 // pred_region
          %671 = dma.done [#allocation10], 16
        $region112: #{tpu_custom_call.1} parent=95 // pred_fallthru
          _
        // Predicated region
        $region113: #{tpu_custom_call.1} parent=95 // pred_check
          %p672 = pneg %p231
        $region114: #{tpu_custom_call.1} parent=95 // pred_check_branch
          %674 = sbr.rel (%p672) target = $region116
        $region115: #{tpu_custom_call.1} parent=95 // pred_region
          %675 = dma.done [#allocation10], 256
        $region116: #{tpu_custom_call.1} parent=95 // pred_fallthru
          _
        // Predicated region
        $region117: #{tpu_custom_call.1} parent=95 // pred_check
          %p676 = pneg %p252
        $region118: #{tpu_custom_call.1} parent=95 // pred_check_branch
          %678 = sbr.rel (%p676) target = $region120
        $region119: #{tpu_custom_call.1} parent=95 // pred_region
          %679 = dma.done [#allocation13], 16
        $region120: #{tpu_custom_call.1} parent=95 // pred_fallthru
          _
        // Predicated region
        $region121: #{tpu_custom_call.1} parent=95 // pred_check
          %p680 = pneg %p357
        $region122: #{tpu_custom_call.1} parent=95 // pred_check_branch
          %682 = sbr.rel (%p680) target = $region124
        $region123: #{tpu_custom_call.1} parent=95 // pred_region
          %683 = dma.done [#allocation13], 256
        $region124: #{tpu_custom_call.1} parent=95 // pred_fallthru
          _
        %p684 = scmp.lt.s32.totalorder %s43, 1
        %s685 = scalar_select %p684, %s43, 1
        %p686 = scmp.lt.s32.totalorder %s44, 0
        %s687 = scalar_select %p686, %s44, 0
        %s688 = sadd.s32 %s687, %s685
        %s689 = smul.addr %s688, 8
        %s690 = scalar_lea.vmem %s0, %s689
        %p691 = pneg %p74
        %p692 = pneg %p71
        %p693 = scmp.lt.s32.totalorder %s43, 1
        %s694 = scalar_select %p693, %s43, 1
        %s695 = smul.addr %s694, 8
        %s696 = scalar_lea.vmem %s1, %s695
        %p697 = pneg %p100
        %p698 = pneg %p97
        %s699 = sand.u32 %s113, 1
        %s700 = scalar_lea.sflag [#allocation4], %s699
        %s701 = sand.u32 %s113, 1
        %s702 = scalar_lea.vmem [#allocation3], %s701
        %p703 = pneg %p126
        %p704 = pneg %p123
        %p705 = pneg %p147
        %p706 = pneg %p144
        %p707 = pneg %p168
        %p708 = pneg %p165
        %p709 = pneg %p189
        %p710 = pneg %p186
        %p711 = pneg %p210
        %p712 = pneg %p207
        %p713 = pneg %p231
        %p714 = pneg %p228
        %p715 = pneg %p252
        %p716 = pneg %p249
        %p717 = pneg %p273
        %p718 = pneg %p270
        %p719 = pneg %p294
        %p720 = pneg %p291
        %p721 = pneg %p315
        %p722 = pneg %p312
        %p723 = pneg %p336
        %p724 = pneg %p333
        %p725 = pneg %p357
        %p726 = pneg %p354
        %p727 = pneg %p378
        %p728 = pneg %p375
        %p729 = pneg %p399
        %p730 = pneg %p396
        %p731 = pneg %p420
        %p732 = pneg %p417
        %p733 = pneg %p441
        %p734 = pneg %p438
        %p735 = pneg %p462
        %p736 = pneg %p459
        %p737 = pneg %p490
        %p738 = pneg %p487
        %s739 = sand.u32 %s477, 1
        %s740 = scalar_lea.sflag [#allocation5], %s739
        %s741 = sand.u32 %s477, 1
        %s742 = smul.addr %s741, 8
        %s743 = scalar_lea.vmem [#allocation15], %s742
        %p744 = scmp.lt.s32.totalorder %s43, 1
        %s745 = scalar_select %p744, %s43, 1
        %p746 = scmp.lt.s32.totalorder %s44, 0
        %s747 = scalar_select %p746, %s44, 0
        %s748 = sadd.s32 %s747, %s745
        %s749 = smul.addr %s748, 8
        %s750 = scalar_lea.vmem %s0, %s749
        %p751 = scmp.lt.s32.totalorder %s43, 1
        %s752 = scalar_select %p751, %s43, 1
        %s753 = smul.addr %s752, 8
        %s754 = scalar_lea.vmem %s1, %s753
        %v756 = vld [vmem:[%s750] sm:$0xff]
        %v757 = vpack.c.bf16 %v756, %v756
        %v758 = vld [vmem:[%s754] sm:$0xff]
        %v759 = vpack.c.bf16 %v758, %v758
        %v760 = vld [vmem:[%s655] sm:$0x1]
        %vm761 = vcmp.eq.f32.partialorder %v760, 0.0
        %v762 = vsel %vm761, -1e+10, 0.0
        %v763 = vld [vmem:[%s3] sm:$0xf]
        %v764 = vld [vmem:[%s3 + $0x4] sm:$0xf]
        %v765 = vld [vmem:[%s3 + $0x8] sm:$0xf]
        %v766 = vld [vmem:[%s3 + $0xc] sm:$0xf]
        %v767 = vld [vmem:[#allocation6] sm:$0x1]
        %v769 = vlaneseq
        %v770 = vshrl.u32 %v769, 7
        %v771 = vsub.s32 0, %v770
        %v772 = vrot.slane %v767, %v771
        %v778 = vunpack.c.l.b16 %v763
        %v779 = vunpack.c.l.b16 %v764
        %v780 = vunpack.c.l.b16 %v765
        %v781 = vunpack.c.l.b16 %v766
        %v782 = vpack.c.b16 %v779, %v778
        %v783 = vpack.c.b16 %v781, %v780
        %vm786 = vcmask 261120
        %v788 = vsel %vm786, %v757, 0
        %790 = vmatprep.subr.bf16.mxu0 0
        %791 = vmatpush1.bf16.msra.mxu0 0
        %792 = vmatprep.subr.bf16.mxu0 0
        %793 = vmatpush1.bf16.msra.mxu0 0
        %794 = vmatprep.subr.bf16.mxu0 0
        %795 = vmatpush1.bf16.msra.mxu0 0
        %796 = vmatprep.subr.bf16.mxu0 0
        %797 = vmatpush1.bf16.msra.mxu0 0
        %798 = vmatprep.subr.bf16.mxu0 0
        %799 = vmatpush1.bf16.msra.mxu0 0
        %800 = vmatprep.subr.bf16.mxu0 0
        %801 = vmatpush1.bf16.msra.mxu0 0
        %802 = vmatprep.subr.bf16.mxu0 0
        %803 = vmatpush1.bf16.msra.mxu0 %v783
        %804 = vmatprep.subr.bf16.mxu0 0
        %805 = vmatpush1.bf16.msra.mxu0 %v782
        %806 = vmatprep.subr.bf16.mxu0 0
        %807 = vmatpush2.bf16.msra.mxu0 0
        %808 = vmatprep.subr.bf16.mxu0 0
        %809 = vmatpush2.bf16.msra.mxu0 0
        %810 = vmatprep.subr.bf16.mxu0 0
        %811 = vmatpush2.bf16.msra.mxu0 0
        %812 = vmatprep.subr.bf16.mxu0 0
        %813 = vmatpush2.bf16.msra.mxu0 0
        %814 = vmatprep.subr.bf16.mxu0 0
        %815 = vmatpush2.bf16.msra.mxu0 0
        %816 = vmatprep.subr.bf16.mxu0 0
        %817 = vmatpush2.bf16.msra.mxu0 0
        %818 = vmatprep.subr.bf16.mxu0 0
        %819 = vmatpush2.bf16.msra.mxu0 0
        %820 = vmatprep.subr.bf16.mxu0 0
        %821 = vmatpush2.bf16.msra.mxu0 0
        %822 = vmatprep.mubr.bf16.mxu0 0
        %823 = vmatmul.mubr.bf16.gmra.mxu0 %v788
        %v824 = vpop.f32.mrf.mxu0
        %v825 = vadd.f32 %v772, %v824
        %v826 = vpop.f32.mrf.mxu0
        %v827 = vpop.f32.mrf.mxu0
        %v828 = vpop.f32.mrf.mxu0
        %829 = vdwg.mxu0
        %v830 = vld [vmem:[#allocation8] sm:$0xf]
        %v831 = vld [vmem:[#allocation8 + $0x4] sm:$0xf]
        %v832 = vld [vmem:[#allocation8 + $0x8] sm:$0xf]
        %v833 = vld [vmem:[#allocation8 + $0xc] sm:$0xf]
        %v834 = vld [vmem:[#allocation9] sm:$0x1]
        %v836 = vlaneseq
        %v837 = vshrl.u32 %v836, 7
        %v838 = vsub.s32 0, %v837
        %v839 = vrot.slane %v834, %v838
        %v845 = vunpack.c.l.b16 %v830
        %v846 = vunpack.c.l.b16 %v831
        %v847 = vunpack.c.l.b16 %v832
        %v848 = vunpack.c.l.b16 %v833
        %v849 = vpack.c.b16 %v846, %v845
        %v850 = vpack.c.b16 %v848, %v847
        %v854 = vsel %vm786, %v759, 0
        %856 = vmatprep.subr.bf16.mxu0 0
        %857 = vmatpush1.bf16.msra.mxu0 0
        %858 = vmatprep.subr.bf16.mxu0 0
        %859 = vmatpush1.bf16.msra.mxu0 0
        %860 = vmatprep.subr.bf16.mxu0 0
        %861 = vmatpush1.bf16.msra.mxu0 0
        %862 = vmatprep.subr.bf16.mxu0 0
        %863 = vmatpush1.bf16.msra.mxu0 0
        %864 = vmatprep.subr.bf16.mxu0 0
        %865 = vmatpush1.bf16.msra.mxu0 0
        %866 = vmatprep.subr.bf16.mxu0 0
        %867 = vmatpush1.bf16.msra.mxu0 0
        %868 = vmatprep.subr.bf16.mxu0 0
        %869 = vmatpush1.bf16.msra.mxu0 %v850
        %870 = vmatprep.subr.bf16.mxu0 0
        %871 = vmatpush1.bf16.msra.mxu0 %v849
        %872 = vmatprep.subr.bf16.mxu0 0
        %873 = vmatpush2.bf16.msra.mxu0 0
        %874 = vmatprep.subr.bf16.mxu0 0
        %875 = vmatpush2.bf16.msra.mxu0 0
        %876 = vmatprep.subr.bf16.mxu0 0
        %877 = vmatpush2.bf16.msra.mxu0 0
        %878 = vmatprep.subr.bf16.mxu0 0
        %879 = vmatpush2.bf16.msra.mxu0 0
        %880 = vmatprep.subr.bf16.mxu0 0
        %881 = vmatpush2.bf16.msra.mxu0 0
        %882 = vmatprep.subr.bf16.mxu0 0
        %883 = vmatpush2.bf16.msra.mxu0 0
        %884 = vmatprep.subr.bf16.mxu0 0
        %885 = vmatpush2.bf16.msra.mxu0 0
        %886 = vmatprep.subr.bf16.mxu0 0
        %887 = vmatpush2.bf16.msra.mxu0 0
        %888 = vmatprep.mubr.bf16.mxu0 0
        %889 = vmatmul.mubr.bf16.gmra.mxu0 %v854
        %v890 = vpop.f32.mrf.mxu0
        %v891 = vadd.f32 %v839, %v890
        %v892 = vpop.f32.mrf.mxu0
        %v893 = vpop.f32.mrf.mxu0
        %v894 = vpop.f32.mrf.mxu0
        %895 = vdwg.mxu0
        %v896 = vld [vmem:[#allocation11] sm:$0xf]
        %v897 = vld [vmem:[#allocation11 + $0x4] sm:$0xf]
        %v898 = vld [vmem:[#allocation11 + $0x8] sm:$0xf]
        %v899 = vld [vmem:[#allocation11 + $0xc] sm:$0xf]
        %v900 = vld [vmem:[#allocation12] sm:$0x1]
        %v902 = vlaneseq
        %v903 = vshrl.u32 %v902, 7
        %v904 = vsub.s32 0, %v903
        %v905 = vrot.slane %v900, %v904
        %v911 = vunpack.c.l.b16 %v896
        %v912 = vunpack.c.l.b16 %v897
        %v913 = vunpack.c.l.b16 %v898
        %v914 = vunpack.c.l.b16 %v899
        %v915 = vpack.c.b16 %v912, %v911
        %v916 = vpack.c.b16 %v914, %v913
        %919 = vmatprep.subr.bf16.mxu0 0
        %920 = vmatpush1.bf16.msra.mxu0 0
        %921 = vmatprep.subr.bf16.mxu0 0
        %922 = vmatpush1.bf16.msra.mxu0 0
        %923 = vmatprep.subr.bf16.mxu0 0
        %924 = vmatpush1.bf16.msra.mxu0 0
        %925 = vmatprep.subr.bf16.mxu0 0
        %926 = vmatpush1.bf16.msra.mxu0 0
        %927 = vmatprep.subr.bf16.mxu0 0
        %928 = vmatpush1.bf16.msra.mxu0 0
        %929 = vmatprep.subr.bf16.mxu0 0
        %930 = vmatpush1.bf16.msra.mxu0 0
        %931 = vmatprep.subr.bf16.mxu0 0
        %932 = vmatpush1.bf16.msra.mxu0 %v916
        %933 = vmatprep.subr.bf16.mxu0 0
        %934 = vmatpush1.bf16.msra.mxu0 %v915
        %935 = vmatprep.subr.bf16.mxu0 0
        %936 = vmatpush2.bf16.msra.mxu0 0
        %937 = vmatprep.subr.bf16.mxu0 0
        %938 = vmatpush2.bf16.msra.mxu0 0
        %939 = vmatprep.subr.bf16.mxu0 0
        %940 = vmatpush2.bf16.msra.mxu0 0
        %941 = vmatprep.subr.bf16.mxu0 0
        %942 = vmatpush2.bf16.msra.mxu0 0
        %943 = vmatprep.subr.bf16.mxu0 0
        %944 = vmatpush2.bf16.msra.mxu0 0
        %945 = vmatprep.subr.bf16.mxu0 0
        %946 = vmatpush2.bf16.msra.mxu0 0
        %947 = vmatprep.subr.bf16.mxu0 0
        %948 = vmatpush2.bf16.msra.mxu0 0
        %949 = vmatprep.subr.bf16.mxu0 0
        %950 = vmatpush2.bf16.msra.mxu0 0
        %951 = vmatprep.mubr.bf16.mxu0 0
        %952 = vmatmul.mubr.bf16.gmra.mxu0 %v854
        %v953 = vpop.f32.mrf.mxu0
        %v954 = vadd.f32 %v905, %v953
        %v955 = vpop.f32.mrf.mxu0
        %v956 = vpop.f32.mrf.mxu0
        %v957 = vpop.f32.mrf.mxu0
        %958 = vdwg.mxu0
        %v959 = vmul.f32 %v825, 0.35355338
        %v960 = vpack.c.bf16 %v959, %v959
        %v961 = vpack.c.bf16 %v891, %v891
        %v962 = vpack.c.bf16 %v954, %v954
        %v964 = vlaneseq
        %v965 = vshrl.u32 %v964, 7
        %v966 = vsub.s32 0, %v965
        %v967 = vrot.slane %v762, %v966
        %vm969 = vcmask 64512
        %v971 = vsel %vm969, %v960, 0
        %v974 = vsel %vm969, %v961, 0
        %976 = vmatprep.subr.bf16.mxu0 0
        %977 = vmatpush1.bf16.xpose.msra.mxu0 0
        %978 = vmatprep.subr.bf16.mxu0 0
        %979 = vmatpush1.bf16.xpose.msra.mxu0 0
        %980 = vmatprep.subr.bf16.mxu0 0
        %981 = vmatpush1.bf16.xpose.msra.mxu0 0
        %982 = vmatprep.subr.bf16.mxu0 0
        %983 = vmatpush1.bf16.xpose.msra.mxu0 0
        %984 = vmatprep.subr.bf16.mxu0 0
        %985 = vmatpush1.bf16.xpose.msra.mxu0 0
        %986 = vmatprep.subr.bf16.mxu0 0
        %987 = vmatpush1.bf16.xpose.msra.mxu0 0
        %988 = vmatprep.subr.bf16.mxu0 0
        %989 = vmatpush1.bf16.xpose.msra.mxu0 0
        %990 = vmatprep.subr.bf16.mxu0 0
        %991 = vmatpush1.bf16.xpose.msra.mxu0 %v974
        %992 = vmatprep.subr.bf16.mxu0 0
        %993 = vmatpush2.bf16.xpose.msra.mxu0 0
        %994 = vmatprep.subr.bf16.mxu0 0
        %995 = vmatpush2.bf16.xpose.msra.mxu0 0
        %996 = vmatprep.subr.bf16.mxu0 0
        %997 = vmatpush2.bf16.xpose.msra.mxu0 0
        %998 = vmatprep.subr.bf16.mxu0 0
        %999 = vmatpush2.bf16.xpose.msra.mxu0 0
        %1000 = vmatprep.subr.bf16.mxu0 0
        %1001 = vmatpush2.bf16.xpose.msra.mxu0 0
        %1002 = vmatprep.subr.bf16.mxu0 0
        %1003 = vmatpush2.bf16.xpose.msra.mxu0 0
        %1004 = vmatprep.subr.bf16.mxu0 0
        %1005 = vmatpush2.bf16.xpose.msra.mxu0 0
        %1006 = vmatprep.subr.bf16.mxu0 0
        %1007 = vmatpush2.bf16.xpose.msra.mxu0 0
        %1008 = vmatprep.mubr.bf16.mxu0 0
        %1009 = vmatmul.mubr.bf16.gmra.mxu0 %v971
        %v1010 = vpop.f32.mrf.mxu0
        %v1011 = vadd.f32 %v967, %v1010
        %v1012 = vpop.f32.mrf.mxu0
        %v1013 = vpop.f32.mrf.mxu0
        %v1014 = vpop.f32.mrf.mxu0
        %1015 = vdwg.mxu0
        %v1016 = vsel %vm969, %v1011, -inf
        %1017 = vmax.xlane.f32.xlu0 %v1016
        %v1018 = vpop.xlane.xlu0 %1017
        %v1019 = vsub.f32 %v1011, %v1018
        %v1020 = vmul.f32 %v1019, 1.442695
        %v1021 = vpow.pop %v1020
        %v1022 = vsel %vm969, %v1021, 0.0
        %1023 = vadd.xlane.f32.xlu0 %v1022
        %v1024 = vpop.xlane.xlu0 %1023
        %v1025 = vrcp.pop %v1024
        %v1026 = vmul.f32 %v1021, %v1025
        %v1027 = vpack.c.bf16 %v1026, %v1026
        %v1029 = vsel %vm969, %v1027, 0
        %vm1031 = vcmask 1043456
        %v1033 = vsel %vm1031, %v962, 0
        %1035 = vmatprep.subr.bf16.mxu0 0
        %1036 = vmatpush1.bf16.msra.mxu0 0
        %1037 = vmatprep.subr.bf16.mxu0 0
        %1038 = vmatpush1.bf16.msra.mxu0 0
        %1039 = vmatprep.subr.bf16.mxu0 0
        %1040 = vmatpush1.bf16.msra.mxu0 0
        %1041 = vmatprep.subr.bf16.mxu0 0
        %1042 = vmatpush1.bf16.msra.mxu0 0
        %1043 = vmatprep.subr.bf16.mxu0 0
        %1044 = vmatpush1.bf16.msra.mxu0 0
        %1045 = vmatprep.subr.bf16.mxu0 0
        %1046 = vmatpush1.bf16.msra.mxu0 0
        %1047 = vmatprep.subr.bf16.mxu0 0
        %1048 = vmatpush1.bf16.msra.mxu0 0
        %1049 = vmatprep.subr.bf16.mxu0 0
        %1050 = vmatpush1.bf16.msra.mxu0 %v1033
        %1051 = vmatprep.subr.bf16.mxu0 0
        %1052 = vmatpush2.bf16.msra.mxu0 0
        %1053 = vmatprep.subr.bf16.mxu0 0
        %1054 = vmatpush2.bf16.msra.mxu0 0
        %1055 = vmatprep.subr.bf16.mxu0 0
        %1056 = vmatpush2.bf16.msra.mxu0 0
        %1057 = vmatprep.subr.bf16.mxu0 0
        %1058 = vmatpush2.bf16.msra.mxu0 0
        %1059 = vmatprep.subr.bf16.mxu0 0
        %1060 = vmatpush2.bf16.msra.mxu0 0
        %1061 = vmatprep.subr.bf16.mxu0 0
        %1062 = vmatpush2.bf16.msra.mxu0 0
        %1063 = vmatprep.subr.bf16.mxu0 0
        %1064 = vmatpush2.bf16.msra.mxu0 0
        %1065 = vmatprep.subr.bf16.mxu0 0
        %1066 = vmatpush2.bf16.msra.mxu0 0
        %1067 = vmatprep.mubr.bf16.mxu0 0
        %1068 = vmatmul.mubr.bf16.gmra.mxu0 %v1029
        %v1069 = vpop.f32.mrf.mxu0
        %v1070 = vadd.f32 0.0, %v1069
        %v1071 = vpop.f32.mrf.mxu0
        %v1072 = vpop.f32.mrf.mxu0
        %v1073 = vpop.f32.mrf.mxu0
        %1074 = vdwg.mxu0
        %1075 = vst.msk [vmem:[#allocation2] sm:$0xff] %vm969, %v1070
        %1077 = vrot.lane.b32.xlu0 %v960, 120
        %v1078 = vpop.permute.xlu0 %1077
        %1080 = vrot.lane.b32.xlu0 %v961, 120
        %v1081 = vpop.permute.xlu0 %1080
        %v1083 = vsel %vm969, %v1078, 0
        %v1086 = vsel %vm969, %v1081, 0
        %1088 = vmatprep.subr.bf16.mxu0 0
        %1089 = vmatpush1.bf16.xpose.msra.mxu0 0
        %1090 = vmatprep.subr.bf16.mxu0 0
        %1091 = vmatpush1.bf16.xpose.msra.mxu0 0
        %1092 = vmatprep.subr.bf16.mxu0 0
        %1093 = vmatpush1.bf16.xpose.msra.mxu0 0
        %1094 = vmatprep.subr.bf16.mxu0 0
        %1095 = vmatpush1.bf16.xpose.msra.mxu0 0
        %1096 = vmatprep.subr.bf16.mxu0 0
        %1097 = vmatpush1.bf16.xpose.msra.mxu0 0
        %1098 = vmatprep.subr.bf16.mxu0 0
        %1099 = vmatpush1.bf16.xpose.msra.mxu0 0
        %1100 = vmatprep.subr.bf16.mxu0 0
        %1101 = vmatpush1.bf16.xpose.msra.mxu0 0
        %1102 = vmatprep.subr.bf16.mxu0 0
        %1103 = vmatpush1.bf16.xpose.msra.mxu0 %v1086
        %1104 = vmatprep.subr.bf16.mxu0 0
        %1105 = vmatpush2.bf16.xpose.msra.mxu0 0
        %1106 = vmatprep.subr.bf16.mxu0 0
        %1107 = vmatpush2.bf16.xpose.msra.mxu0 0
        %1108 = vmatprep.subr.bf16.mxu0 0
        %1109 = vmatpush2.bf16.xpose.msra.mxu0 0
        %1110 = vmatprep.subr.bf16.mxu0 0
        %1111 = vmatpush2.bf16.xpose.msra.mxu0 0
        %1112 = vmatprep.subr.bf16.mxu0 0
        %1113 = vmatpush2.bf16.xpose.msra.mxu0 0
        %1114 = vmatprep.subr.bf16.mxu0 0
        %1115 = vmatpush2.bf16.xpose.msra.mxu0 0
        %1116 = vmatprep.subr.bf16.mxu0 0
        %1117 = vmatpush2.bf16.xpose.msra.mxu0 0
        %1118 = vmatprep.subr.bf16.mxu0 0
        %1119 = vmatpush2.bf16.xpose.msra.mxu0 0
        %1120 = vmatprep.mubr.bf16.mxu0 0
        %1121 = vmatmul.mubr.bf16.gmra.mxu0 %v1083
        %v1122 = vpop.f32.mrf.mxu0
        %v1123 = vadd.f32 %v967, %v1122
        %v1124 = vpop.f32.mrf.mxu0
        %v1125 = vpop.f32.mrf.mxu0
        %v1126 = vpop.f32.mrf.mxu0
        %1127 = vdwg.mxu0
        %v1128 = vsel %vm969, %v1123, -inf
        %1129 = vmax.xlane.f32.xlu0 %v1128
        %v1130 = vpop.xlane.xlu0 %1129
        %v1131 = vsub.f32 %v1123, %v1130
        %v1132 = vmul.f32 %v1131, 1.442695
        %v1133 = vpow.pop %v1132
        %v1134 = vsel %vm969, %v1133, 0.0
        %1135 = vadd.xlane.f32.xlu0 %v1134
        %v1136 = vpop.xlane.xlu0 %1135
        %v1137 = vrcp.pop %v1136
        %v1138 = vmul.f32 %v1133, %v1137
        %v1139 = vpack.c.bf16 %v1138, %v1138
        %1141 = vrot.lane.b32.xlu0 %v962, 120
        %v1142 = vpop.permute.xlu0 %1141
        %v1144 = vsel %vm969, %v1139, 0
        %v1147 = vsel %vm1031, %v1142, 0
        %1149 = vmatprep.subr.bf16.mxu0 0
        %1150 = vmatpush1.bf16.msra.mxu0 0
        %1151 = vmatprep.subr.bf16.mxu0 0
        %1152 = vmatpush1.bf16.msra.mxu0 0
        %1153 = vmatprep.subr.bf16.mxu0 0
        %1154 = vmatpush1.bf16.msra.mxu0 0
        %1155 = vmatprep.subr.bf16.mxu0 0
        %1156 = vmatpush1.bf16.msra.mxu0 0
        %1157 = vmatprep.subr.bf16.mxu0 0
        %1158 = vmatpush1.bf16.msra.mxu0 0
        %1159 = vmatprep.subr.bf16.mxu0 0
        %1160 = vmatpush1.bf16.msra.mxu0 0
        %1161 = vmatprep.subr.bf16.mxu0 0
        %1162 = vmatpush1.bf16.msra.mxu0 0
        %1163 = vmatprep.subr.bf16.mxu0 0
        %1164 = vmatpush1.bf16.msra.mxu0 %v1147
        %1165 = vmatprep.subr.bf16.mxu0 0
        %1166 = vmatpush2.bf16.msra.mxu0 0
        %1167 = vmatprep.subr.bf16.mxu0 0
        %1168 = vmatpush2.bf16.msra.mxu0 0
        %1169 = vmatprep.subr.bf16.mxu0 0
        %1170 = vmatpush2.bf16.msra.mxu0 0
        %1171 = vmatprep.subr.bf16.mxu0 0
        %1172 = vmatpush2.bf16.msra.mxu0 0
        %1173 = vmatprep.subr.bf16.mxu0 0
        %1174 = vmatpush2.bf16.msra.mxu0 0
        %1175 = vmatprep.subr.bf16.mxu0 0
        %1176 = vmatpush2.bf16.msra.mxu0 0
        %1177 = vmatprep.subr.bf16.mxu0 0
        %1178 = vmatpush2.bf16.msra.mxu0 0
        %1179 = vmatprep.subr.bf16.mxu0 0
        %1180 = vmatpush2.bf16.msra.mxu0 0
        %1181 = vmatprep.mubr.bf16.mxu0 0
        %1182 = vmatmul.mubr.bf16.gmra.mxu0 %v1144
        %v1183 = vpop.f32.mrf.mxu0
        %v1184 = vadd.f32 0.0, %v1183
        %v1185 = vpop.f32.mrf.mxu0
        %v1186 = vpop.f32.mrf.mxu0
        %v1187 = vpop.f32.mrf.mxu0
        %1188 = vdwg.mxu0
        %1190 = vrot.lane.b32.xlu0 %v1184, 8
        %v1191 = vpop.permute.xlu0 %1190
        %vm1193 = vcmask 130112
        %1194 = vst.msk [vmem:[#allocation2] sm:$0xff] %vm1193, %v1191
        %1195 = vrot.lane.b32.xlu0 %v960, 112
        %v1196 = vpop.permute.xlu0 %1195
        %1197 = vrot.lane.b32.xlu0 %v961, 112
        %v1198 = vpop.permute.xlu0 %1197
        %v1200 = vsel %vm969, %v1196, 0
        %v1203 = vsel %vm969, %v1198, 0
        %1205 = vmatprep.subr.bf16.mxu0 0
        %1206 = vmatpush1.bf16.xpose.msra.mxu0 0
        %1207 = vmatprep.subr.bf16.mxu0 0
        %1208 = vmatpush1.bf16.xpose.msra.mxu0 0
        %1209 = vmatprep.subr.bf16.mxu0 0
        %1210 = vmatpush1.bf16.xpose.msra.mxu0 0
        %1211 = vmatprep.subr.bf16.mxu0 0
        %1212 = vmatpush1.bf16.xpose.msra.mxu0 0
        %1213 = vmatprep.subr.bf16.mxu0 0
        %1214 = vmatpush1.bf16.xpose.msra.mxu0 0
        %1215 = vmatprep.subr.bf16.mxu0 0
        %1216 = vmatpush1.bf16.xpose.msra.mxu0 0
        %1217 = vmatprep.subr.bf16.mxu0 0
        %1218 = vmatpush1.bf16.xpose.msra.mxu0 0
        %1219 = vmatprep.subr.bf16.mxu0 0
        %1220 = vmatpush1.bf16.xpose.msra.mxu0 %v1203
        %1221 = vmatprep.subr.bf16.mxu0 0
        %1222 = vmatpush2.bf16.xpose.msra.mxu0 0
        %1223 = vmatprep.subr.bf16.mxu0 0
        %1224 = vmatpush2.bf16.xpose.msra.mxu0 0
        %1225 = vmatprep.subr.bf16.mxu0 0
        %1226 = vmatpush2.bf16.xpose.msra.mxu0 0
        %1227 = vmatprep.subr.bf16.mxu0 0
        %1228 = vmatpush2.bf16.xpose.msra.mxu0 0
        %1229 = vmatprep.subr.bf16.mxu0 0
        %1230 = vmatpush2.bf16.xpose.msra.mxu0 0
        %1231 = vmatprep.subr.bf16.mxu0 0
        %1232 = vmatpush2.bf16.xpose.msra.mxu0 0
        %1233 = vmatprep.subr.bf16.mxu0 0
        %1234 = vmatpush2.bf16.xpose.msra.mxu0 0
        %1235 = vmatprep.subr.bf16.mxu0 0
        %1236 = vmatpush2.bf16.xpose.msra.mxu0 0
        %1237 = vmatprep.mubr.bf16.mxu0 0
        %1238 = vmatmul.mubr.bf16.gmra.mxu0 %v1200
        %v1239 = vpop.f32.mrf.mxu0
        %v1240 = vadd.f32 %v967, %v1239
        %v1241 = vpop.f32.mrf.mxu0
        %v1242 = vpop.f32.mrf.mxu0
        %v1243 = vpop.f32.mrf.mxu0
        %1244 = vdwg.mxu0
        %v1245 = vsel %vm969, %v1240, -inf
        %1246 = vmax.xlane.f32.xlu0 %v1245
        %v1247 = vpop.xlane.xlu0 %1246
        %v1248 = vsub.f32 %v1240, %v1247
        %v1249 = vmul.f32 %v1248, 1.442695
        %v1250 = vpow.pop %v1249
        %v1251 = vsel %vm969, %v1250, 0.0
        %1252 = vadd.xlane.f32.xlu0 %v1251
        %v1253 = vpop.xlane.xlu0 %1252
        %v1254 = vrcp.pop %v1253
        %v1255 = vmul.f32 %v1250, %v1254
        %v1256 = vpack.c.bf16 %v1255, %v1255
        %1257 = vrot.lane.b32.xlu0 %v962, 112
        %v1258 = vpop.permute.xlu0 %1257
        %v1260 = vsel %vm969, %v1256, 0
        %v1263 = vsel %vm1031, %v1258, 0
        %1265 = vmatprep.subr.bf16.mxu0 0
        %1266 = vmatpush1.bf16.msra.mxu0 0
        %1267 = vmatprep.subr.bf16.mxu0 0
        %1268 = vmatpush1.bf16.msra.mxu0 0
        %1269 = vmatprep.subr.bf16.mxu0 0
        %1270 = vmatpush1.bf16.msra.mxu0 0
        %1271 = vmatprep.subr.bf16.mxu0 0
        %1272 = vmatpush1.bf16.msra.mxu0 0
        %1273 = vmatprep.subr.bf16.mxu0 0
        %1274 = vmatpush1.bf16.msra.mxu0 0
        %1275 = vmatprep.subr.bf16.mxu0 0
        %1276 = vmatpush1.bf16.msra.mxu0 0
        %1277 = vmatprep.subr.bf16.mxu0 0
        %1278 = vmatpush1.bf16.msra.mxu0 0
        %1279 = vmatprep.subr.bf16.mxu0 0
        %1280 = vmatpush1.bf16.msra.mxu0 %v1263
        %1281 = vmatprep.subr.bf16.mxu0 0
        %1282 = vmatpush2.bf16.msra.mxu0 0
        %1283 = vmatprep.subr.bf16.mxu0 0
        %1284 = vmatpush2.bf16.msra.mxu0 0
        %1285 = vmatprep.subr.bf16.mxu0 0
        %1286 = vmatpush2.bf16.msra.mxu0 0
        %1287 = vmatprep.subr.bf16.mxu0 0
        %1288 = vmatpush2.bf16.msra.mxu0 0
        %1289 = vmatprep.subr.bf16.mxu0 0
        %1290 = vmatpush2.bf16.msra.mxu0 0
        %1291 = vmatprep.subr.bf16.mxu0 0
        %1292 = vmatpush2.bf16.msra.mxu0 0
        %1293 = vmatprep.subr.bf16.mxu0 0
        %1294 = vmatpush2.bf16.msra.mxu0 0
        %1295 = vmatprep.subr.bf16.mxu0 0
        %1296 = vmatpush2.bf16.msra.mxu0 0
        %1297 = vmatprep.mubr.bf16.mxu0 0
        %1298 = vmatmul.mubr.bf16.gmra.mxu0 %v1260
        %v1299 = vpop.f32.mrf.mxu0
        %v1300 = vadd.f32 0.0, %v1299
        %v1301 = vpop.f32.mrf.mxu0
        %v1302 = vpop.f32.mrf.mxu0
        %v1303 = vpop.f32.mrf.mxu0
        %1304 = vdwg.mxu0
        %1306 = vrot.lane.b32.xlu0 %v1300, 16
        %v1307 = vpop.permute.xlu0 %1306
        %vm1309 = vcmask 195712
        %1310 = vst.msk [vmem:[#allocation2] sm:$0xff] %vm1309, %v1307
        %1311 = vrot.lane.b32.xlu0 %v960, 104
        %v1312 = vpop.permute.xlu0 %1311
        %1313 = vrot.lane.b32.xlu0 %v961, 104
        %v1314 = vpop.permute.xlu0 %1313
        %v1316 = vsel %vm969, %v1312, 0
        %v1319 = vsel %vm969, %v1314, 0
        %1321 = vmatprep.subr.bf16.mxu0 0
        %1322 = vmatpush1.bf16.xpose.msra.mxu0 0
        %1323 = vmatprep.subr.bf16.mxu0 0
        %1324 = vmatpush1.bf16.xpose.msra.mxu0 0
        %1325 = vmatprep.subr.bf16.mxu0 0
        %1326 = vmatpush1.bf16.xpose.msra.mxu0 0
        %1327 = vmatprep.subr.bf16.mxu0 0
        %1328 = vmatpush1.bf16.xpose.msra.mxu0 0
        %1329 = vmatprep.subr.bf16.mxu0 0
        %1330 = vmatpush1.bf16.xpose.msra.mxu0 0
        %1331 = vmatprep.subr.bf16.mxu0 0
        %1332 = vmatpush1.bf16.xpose.msra.mxu0 0
        %1333 = vmatprep.subr.bf16.mxu0 0
        %1334 = vmatpush1.bf16.xpose.msra.mxu0 0
        %1335 = vmatprep.subr.bf16.mxu0 0
        %1336 = vmatpush1.bf16.xpose.msra.mxu0 %v1319
        %1337 = vmatprep.subr.bf16.mxu0 0
        %1338 = vmatpush2.bf16.xpose.msra.mxu0 0
        %1339 = vmatprep.subr.bf16.mxu0 0
        %1340 = vmatpush2.bf16.xpose.msra.mxu0 0
        %1341 = vmatprep.subr.bf16.mxu0 0
        %1342 = vmatpush2.bf16.xpose.msra.mxu0 0
        %1343 = vmatprep.subr.bf16.mxu0 0
        %1344 = vmatpush2.bf16.xpose.msra.mxu0 0
        %1345 = vmatprep.subr.bf16.mxu0 0
        %1346 = vmatpush2.bf16.xpose.msra.mxu0 0
        %1347 = vmatprep.subr.bf16.mxu0 0
        %1348 = vmatpush2.bf16.xpose.msra.mxu0 0
        %1349 = vmatprep.subr.bf16.mxu0 0
        %1350 = vmatpush2.bf16.xpose.msra.mxu0 0
        %1351 = vmatprep.subr.bf16.mxu0 0
        %1352 = vmatpush2.bf16.xpose.msra.mxu0 0
        %1353 = vmatprep.mubr.bf16.mxu0 0
        %1354 = vmatmul.mubr.bf16.gmra.mxu0 %v1316
        %v1355 = vpop.f32.mrf.mxu0
        %v1356 = vadd.f32 %v967, %v1355
        %v1357 = vpop.f32.mrf.mxu0
        %v1358 = vpop.f32.mrf.mxu0
        %v1359 = vpop.f32.mrf.mxu0
        %1360 = vdwg.mxu0
        %v1361 = vsel %vm969, %v1356, -inf
        %1362 = vmax.xlane.f32.xlu0 %v1361
        %v1363 = vpop.xlane.xlu0 %1362
        %v1364 = vsub.f32 %v1356, %v1363
        %v1365 = vmul.f32 %v1364, 1.442695
        %v1366 = vpow.pop %v1365
        %v1367 = vsel %vm969, %v1366, 0.0
        %1368 = vadd.xlane.f32.xlu0 %v1367
        %v1369 = vpop.xlane.xlu0 %1368
        %v1370 = vrcp.pop %v1369
        %v1371 = vmul.f32 %v1366, %v1370
        %v1372 = vpack.c.bf16 %v1371, %v1371
        %1373 = vrot.lane.b32.xlu0 %v962, 104
        %v1374 = vpop.permute.xlu0 %1373
        %v1376 = vsel %vm969, %v1372, 0
        %v1379 = vsel %vm1031, %v1374, 0
        %1381 = vmatprep.subr.bf16.mxu0 0
        %1382 = vmatpush1.bf16.msra.mxu0 0
        %1383 = vmatprep.subr.bf16.mxu0 0
        %1384 = vmatpush1.bf16.msra.mxu0 0
        %1385 = vmatprep.subr.bf16.mxu0 0
        %1386 = vmatpush1.bf16.msra.mxu0 0
        %1387 = vmatprep.subr.bf16.mxu0 0
        %1388 = vmatpush1.bf16.msra.mxu0 0
        %1389 = vmatprep.subr.bf16.mxu0 0
        %1390 = vmatpush1.bf16.msra.mxu0 0
        %1391 = vmatprep.subr.bf16.mxu0 0
        %1392 = vmatpush1.bf16.msra.mxu0 0
        %1393 = vmatprep.subr.bf16.mxu0 0
        %1394 = vmatpush1.bf16.msra.mxu0 0
        %1395 = vmatprep.subr.bf16.mxu0 0
        %1396 = vmatpush1.bf16.msra.mxu0 %v1379
        %1397 = vmatprep.subr.bf16.mxu0 0
        %1398 = vmatpush2.bf16.msra.mxu0 0
        %1399 = vmatprep.subr.bf16.mxu0 0
        %1400 = vmatpush2.bf16.msra.mxu0 0
        %1401 = vmatprep.subr.bf16.mxu0 0
        %1402 = vmatpush2.bf16.msra.mxu0 0
        %1403 = vmatprep.subr.bf16.mxu0 0
        %1404 = vmatpush2.bf16.msra.mxu0 0
        %1405 = vmatprep.subr.bf16.mxu0 0
        %1406 = vmatpush2.bf16.msra.mxu0 0
        %1407 = vmatprep.subr.bf16.mxu0 0
        %1408 = vmatpush2.bf16.msra.mxu0 0
        %1409 = vmatprep.subr.bf16.mxu0 0
        %1410 = vmatpush2.bf16.msra.mxu0 0
        %1411 = vmatprep.subr.bf16.mxu0 0
        %1412 = vmatpush2.bf16.msra.mxu0 0
        %1413 = vmatprep.mubr.bf16.mxu0 0
        %1414 = vmatmul.mubr.bf16.gmra.mxu0 %v1376
        %v1415 = vpop.f32.mrf.mxu0
        %v1416 = vadd.f32 0.0, %v1415
        %v1417 = vpop.f32.mrf.mxu0
        %v1418 = vpop.f32.mrf.mxu0
        %v1419 = vpop.f32.mrf.mxu0
        %1420 = vdwg.mxu0
        %1422 = vrot.lane.b32.xlu0 %v1416, 24
        %v1423 = vpop.permute.xlu0 %1422
        %vm1425 = vcmask 261312
        %1426 = vst.msk [vmem:[#allocation2] sm:$0xff] %vm1425, %v1423
        %v1427 = vld [vmem:[#allocation2] sm:$0xff]
        %v1428 = vpack.c.bf16 %v1427, %v1427
        %v1429 = vld [vmem:[%s9] sm:$0xf]
        %v1430 = vld [vmem:[%s9 + $0x4] sm:$0xf]
        %v1431 = vld [vmem:[%s9 + $0x8] sm:$0xf]
        %v1432 = vld [vmem:[%s9 + $0xc] sm:$0xf]
        %v1433 = vld [vmem:[%s10] sm:$0x1]
        %v1435 = vlaneseq
        %v1436 = vshrl.u32 %v1435, 7
        %v1437 = vsub.s32 0, %v1436
        %v1438 = vrot.slane %v1433, %v1437
        %v1444 = vunpack.c.l.b16 %v1429
        %v1445 = vunpack.c.l.b16 %v1430
        %v1446 = vunpack.c.l.b16 %v1431
        %v1447 = vunpack.c.l.b16 %v1432
        %v1448 = vpack.c.b16 %v1445, %v1444
        %v1449 = vpack.c.b16 %v1447, %v1446
        %v1453 = vsel %vm786, %v1428, 0
        %1455 = vmatprep.subr.bf16.mxu0 0
        %1456 = vmatpush1.bf16.msra.mxu0 0
        %1457 = vmatprep.subr.bf16.mxu0 0
        %1458 = vmatpush1.bf16.msra.mxu0 0
        %1459 = vmatprep.subr.bf16.mxu0 0
        %1460 = vmatpush1.bf16.msra.mxu0 0
        %1461 = vmatprep.subr.bf16.mxu0 0
        %1462 = vmatpush1.bf16.msra.mxu0 0
        %1463 = vmatprep.subr.bf16.mxu0 0
        %1464 = vmatpush1.bf16.msra.mxu0 0
        %1465 = vmatprep.subr.bf16.mxu0 0
        %1466 = vmatpush1.bf16.msra.mxu0 0
        %1467 = vmatprep.subr.bf16.mxu0 0
        %1468 = vmatpush1.bf16.msra.mxu0 %v1449
        %1469 = vmatprep.subr.bf16.mxu0 0
        %1470 = vmatpush1.bf16.msra.mxu0 %v1448
        %1471 = vmatprep.subr.bf16.mxu0 0
        %1472 = vmatpush2.bf16.msra.mxu0 0
        %1473 = vmatprep.subr.bf16.mxu0 0
        %1474 = vmatpush2.bf16.msra.mxu0 0
        %1475 = vmatprep.subr.bf16.mxu0 0
        %1476 = vmatpush2.bf16.msra.mxu0 0
        %1477 = vmatprep.subr.bf16.mxu0 0
        %1478 = vmatpush2.bf16.msra.mxu0 0
        %1479 = vmatprep.subr.bf16.mxu0 0
        %1480 = vmatpush2.bf16.msra.mxu0 0
        %1481 = vmatprep.subr.bf16.mxu0 0
        %1482 = vmatpush2.bf16.msra.mxu0 0
        %1483 = vmatprep.subr.bf16.mxu0 0
        %1484 = vmatpush2.bf16.msra.mxu0 0
        %1485 = vmatprep.subr.bf16.mxu0 0
        %1486 = vmatpush2.bf16.msra.mxu0 0
        %1487 = vmatprep.mubr.bf16.mxu0 0
        %1488 = vmatmul.mubr.bf16.gmra.mxu0 %v1453
        %v1489 = vpop.f32.mrf.mxu0
        %v1490 = vadd.f32 %v1438, %v1489
        %v1491 = vpop.f32.mrf.mxu0
        %v1492 = vpop.f32.mrf.mxu0
        %v1493 = vpop.f32.mrf.mxu0
        %1494 = vdwg.mxu0
        %v1495 = vadd.f32 %v756, %v1490
        %v1496 = vld [vmem:[%s11] sm:$0x1]
        %v1497 = vld [vmem:[%s12] sm:$0x1]
        %v1498 = vsel %vm786, %v1495, 0.0
        %1499 = vadd.xlane.f32.xlu0 %v1498
        %v1500 = vpop.xlane.xlu0 %1499
        %v1501 = vrcp.pop 32.0
        %v1502 = vmul.f32 %v1500, %v1501
        %v1503 = vsub.f32 %v1495, %v1502
        %v1504 = vmul.f32 %v1503, %v1503
        %v1505 = vsel %vm786, %v1504, 0.0
        %1506 = vadd.xlane.f32.xlu0 %v1505
        %v1507 = vpop.xlane.xlu0 %1506
        %v1508 = vmul.f32 %v1507, %v1501
        %v1509 = vadd.f32 %v1508, 1e-05
        %v1510 = vrsqrt.pop %v1509
        %v1511 = vmul.f32 %v1503, %v1510
        %v1513 = vlaneseq
        %v1514 = vshrl.u32 %v1513, 7
        %v1515 = vsub.s32 0, %v1514
        %v1516 = vrot.slane %v1496, %v1515
        %v1518 = vmul.f32 %v1511, %v1516
        %v1520 = vlaneseq
        %v1521 = vshrl.u32 %v1520, 7
        %v1522 = vsub.s32 0, %v1521
        %v1523 = vrot.slane %v1497, %v1522
        %v1525 = vadd.f32 %v1518, %v1523
        %v1526 = vpack.c.bf16 %v1525, %v1525
        %v1527 = vld [vmem:[#allocation14] sm:$0xf]
        %v1528 = vld [vmem:[#allocation14 + $0x4] sm:$0xf]
        %v1529 = vld [vmem:[#allocation14 + $0x8] sm:$0xf]
        %v1530 = vld [vmem:[#allocation14 + $0xc] sm:$0xf]
        %v1531 = vld [vmem:[%s14] sm:$0x1]
        %v1533 = vlaneseq
        %v1534 = vshrl.u32 %v1533, 7
        %v1535 = vsub.s32 0, %v1534
        %v1536 = vrot.slane %v1531, %v1535
        %v1542 = vunpack.c.l.b16 %v1527
        %v1543 = vunpack.c.l.b16 %v1528
        %v1544 = vunpack.c.l.b16 %v1529
        %v1545 = vunpack.c.l.b16 %v1530
        %v1546 = vpack.c.b16 %v1543, %v1542
        %v1547 = vpack.c.b16 %v1545, %v1544
        %v1551 = vsel %vm786, %v1526, 0
        %1553 = vmatprep.subr.bf16.mxu0 0
        %1554 = vmatpush1.bf16.msra.mxu0 0
        %1555 = vmatprep.subr.bf16.mxu0 0
        %1556 = vmatpush1.bf16.msra.mxu0 0
        %1557 = vmatprep.subr.bf16.mxu0 0
        %1558 = vmatpush1.bf16.msra.mxu0 0
        %1559 = vmatprep.subr.bf16.mxu0 0
        %1560 = vmatpush1.bf16.msra.mxu0 0
        %1561 = vmatprep.subr.bf16.mxu0 0
        %1562 = vmatpush1.bf16.msra.mxu0 0
        %1563 = vmatprep.subr.bf16.mxu0 0
        %1564 = vmatpush1.bf16.msra.mxu0 0
        %1565 = vmatprep.subr.bf16.mxu0 0
        %1566 = vmatpush1.bf16.msra.mxu0 %v1547
        %1567 = vmatprep.subr.bf16.mxu0 0
        %1568 = vmatpush1.bf16.msra.mxu0 %v1546
        %1569 = vmatprep.subr.bf16.mxu0 0
        %1570 = vmatpush2.bf16.msra.mxu0 0
        %1571 = vmatprep.subr.bf16.mxu0 0
        %1572 = vmatpush2.bf16.msra.mxu0 0
        %1573 = vmatprep.subr.bf16.mxu0 0
        %1574 = vmatpush2.bf16.msra.mxu0 0
        %1575 = vmatprep.subr.bf16.mxu0 0
        %1576 = vmatpush2.bf16.msra.mxu0 0
        %1577 = vmatprep.subr.bf16.mxu0 0
        %1578 = vmatpush2.bf16.msra.mxu0 0
        %1579 = vmatprep.subr.bf16.mxu0 0
        %1580 = vmatpush2.bf16.msra.mxu0 0
        %1581 = vmatprep.subr.bf16.mxu0 0
        %1582 = vmatpush2.bf16.msra.mxu0 0
        %1583 = vmatprep.subr.bf16.mxu0 0
        %1584 = vmatpush2.bf16.msra.mxu0 0
        %1585 = vmatprep.mubr.bf16.mxu0 0
        %1586 = vmatmul.mubr.bf16.gmra.mxu0 %v1551
        %v1587 = vpop.f32.mrf.mxu0
        %v1588 = vadd.f32 %v1536, %v1587
        %v1589 = vpop.f32.mrf.mxu0
        %v1590 = vpop.f32.mrf.mxu0
        %v1591 = vpop.f32.mrf.mxu0
        %1592 = vdwg.mxu0
        %v1593 = vmax.f32 %v1588, 0.0
        %v1594 = vpack.c.bf16 %v1593, %v1593
        %v1595 = vld [vmem:[%s15] sm:$0xf]
        %v1596 = vld [vmem:[%s15 + $0x4] sm:$0xf]
        %v1597 = vld [vmem:[%s15 + $0x8] sm:$0xf]
        %v1598 = vld [vmem:[%s15 + $0xc] sm:$0xf]
        %v1599 = vld [vmem:[%s15 + $0x10] sm:$0xf]
        %v1600 = vld [vmem:[%s15 + $0x14] sm:$0xf]
        %v1601 = vld [vmem:[%s15 + $0x18] sm:$0xf]
        %v1602 = vld [vmem:[%s15 + $0x1c] sm:$0xf]
        %v1603 = vld [vmem:[%s16] sm:$0x1]
        %v1605 = vlaneseq
        %v1606 = vshrl.u32 %v1605, 7
        %v1607 = vsub.s32 0, %v1606
        %v1608 = vrot.slane %v1603, %v1607
        %v1618 = vunpack.c.l.b16 %v1595
        %v1619 = vunpack.c.l.b16 %v1596
        %v1620 = vunpack.c.l.b16 %v1597
        %v1621 = vunpack.c.l.b16 %v1598
        %v1622 = vunpack.c.l.b16 %v1599
        %v1623 = vunpack.c.l.b16 %v1600
        %v1624 = vunpack.c.l.b16 %v1601
        %v1625 = vunpack.c.l.b16 %v1602
        %v1626 = vpack.c.b16 %v1619, %v1618
        %v1627 = vpack.c.b16 %v1621, %v1620
        %v1628 = vpack.c.b16 %v1623, %v1622
        %v1629 = vpack.c.b16 %v1625, %v1624
        %vm1634 = vcmask 523264
        %v1636 = vsel %vm1634, %v1594, 0
        %1638 = vmatprep.subr.bf16.mxu0 0
        %1639 = vmatpush1.bf16.msra.mxu0 0
        %1640 = vmatprep.subr.bf16.mxu0 0
        %1641 = vmatpush1.bf16.msra.mxu0 0
        %1642 = vmatprep.subr.bf16.mxu0 0
        %1643 = vmatpush1.bf16.msra.mxu0 0
        %1644 = vmatprep.subr.bf16.mxu0 0
        %1645 = vmatpush1.bf16.msra.mxu0 0
        %1646 = vmatprep.subr.bf16.mxu0 0
        %1647 = vmatpush1.bf16.msra.mxu0 %v1629
        %1648 = vmatprep.subr.bf16.mxu0 0
        %1649 = vmatpush1.bf16.msra.mxu0 %v1628
        %1650 = vmatprep.subr.bf16.mxu0 0
        %1651 = vmatpush1.bf16.msra.mxu0 %v1627
        %1652 = vmatprep.subr.bf16.mxu0 0
        %1653 = vmatpush1.bf16.msra.mxu0 %v1626
        %1654 = vmatprep.subr.bf16.mxu0 0
        %1655 = vmatpush2.bf16.msra.mxu0 0
        %1656 = vmatprep.subr.bf16.mxu0 0
        %1657 = vmatpush2.bf16.msra.mxu0 0
        %1658 = vmatprep.subr.bf16.mxu0 0
        %1659 = vmatpush2.bf16.msra.mxu0 0
        %1660 = vmatprep.subr.bf16.mxu0 0
        %1661 = vmatpush2.bf16.msra.mxu0 0
        %1662 = vmatprep.subr.bf16.mxu0 0
        %1663 = vmatpush2.bf16.msra.mxu0 0
        %1664 = vmatprep.subr.bf16.mxu0 0
        %1665 = vmatpush2.bf16.msra.mxu0 0
        %1666 = vmatprep.subr.bf16.mxu0 0
        %1667 = vmatpush2.bf16.msra.mxu0 0
        %1668 = vmatprep.subr.bf16.mxu0 0
        %1669 = vmatpush2.bf16.msra.mxu0 0
        %1670 = vmatprep.mubr.bf16.mxu0 0
        %1671 = vmatmul.mubr.bf16.gmra.mxu0 %v1636
        %v1672 = vpop.f32.mrf.mxu0
        %v1673 = vadd.f32 %v1608, %v1672
        %v1674 = vpop.f32.mrf.mxu0
        %v1675 = vpop.f32.mrf.mxu0
        %v1676 = vpop.f32.mrf.mxu0
        %1677 = vdwg.mxu0
        %v1678 = vadd.f32 %v1525, %v1673
        %v1679 = vld [vmem:[%s17] sm:$0x1]
        %v1680 = vld [vmem:[%s18] sm:$0x1]
        %v1681 = vsel %vm786, %v1678, 0.0
        %1682 = vadd.xlane.f32.xlu0 %v1681
        %v1683 = vpop.xlane.xlu0 %1682
        %v1684 = vmul.f32 %v1683, %v1501
        %v1685 = vsub.f32 %v1678, %v1684
        %v1686 = vmul.f32 %v1685, %v1685
        %v1687 = vsel %vm786, %v1686, 0.0
        %1688 = vadd.xlane.f32.xlu0 %v1687
        %v1689 = vpop.xlane.xlu0 %1688
        %v1690 = vmul.f32 %v1689, %v1501
        %v1691 = vadd.f32 %v1690, 1e-05
        %v1692 = vrsqrt.pop %v1691
        %v1693 = vmul.f32 %v1685, %v1692
        %v1695 = vlaneseq
        %v1696 = vshrl.u32 %v1695, 7
        %v1697 = vsub.s32 0, %v1696
        %v1698 = vrot.slane %v1679, %v1697
        %v1700 = vmul.f32 %v1693, %v1698
        %v1702 = vlaneseq
        %v1703 = vshrl.u32 %v1702, 7
        %v1704 = vsub.s32 0, %v1703
        %v1705 = vrot.slane %v1680, %v1704
        %v1707 = vadd.f32 %v1700, %v1705
        %1708 = vst.msk [vmem:[%s743] sm:$0xff] %vm786, %v1707
        %s1709 = sand.u32 %s477, 1
        %s1710 = scalar_lea.sflag [#allocation5], %s1709
        %s1711 = sand.u32 %s477, 1
        %s1712 = smul.addr %s1711, 8
        %s1713 = scalar_lea.vmem [#allocation15], %s1712
        // Predicated region
        $region125: #{tpu_custom_call.1} parent=95 // pred_check
          %p1714 = pneg %p487
        $region126: #{tpu_custom_call.1} parent=95 // pred_check_branch
          %1716 = sbr.rel (%p1714) target = $region128
        $region127: #{tpu_custom_call.1} parent=95 // pred_region
          %s1718 = ssub.s32 128, 128
          %1719 = vsyncadd %s1710, %s1718
          %s1720 = sadd.s32 %s44, %s43
          %s1721 = smul.addr %s1720, 128
          %s1722 = scalar_lea.hbm %s19, %s1721
          %s1724 = sshll.u32 %s1713, 4
          %s1725 = int_to_ptr.vmem [resolvable:$true] %s1724
          %1727 = dma.vmem_to_hbm [thread:$0]  %s1725, 128, %s1722, %s1710
        $region128: #{tpu_custom_call.1} parent=95 // pred_fallthru
          _
      $region96: #{tpu_custom_call.1} parent=5 // pred_fallthru
        _
      %p1728 = scmp.le.s32.totalorder 2, %s34
      // Predicated region
      $region129: #{tpu_custom_call.1} parent=5 // pred_check
        %p1729 = pneg %p1728
      $region130: #{tpu_custom_call.1} parent=5 // pred_check_branch
        %1731 = sbr.rel (%p1729) target = $region132
      $region131: #{tpu_custom_call.1} parent=5 // pred_region
        %s1732 = ssub.s32 %s34, 2
        // Predicated region
        $region133: #{tpu_custom_call.1} parent=131 // pred_check
          %p1733 = pneg %p493
        $region134: #{tpu_custom_call.1} parent=131 // pred_check_branch
          %1735 = sbr.rel (%p1733) target = $region136
        $region135: #{tpu_custom_call.1} parent=131 // pred_region
          %s1736 = sand.u32 %s478, 1
          %s1737 = scalar_lea.sflag [#allocation5], %s1736
          %s1738 = sand.u32 %s478, 1
          %s1739 = smul.addr %s1738, 8
          %s1740 = scalar_lea.vmem [#allocation15], %s1739
          %1741 = dma.done %s1737, 128
        $region136: #{tpu_custom_call.1} parent=131 // pred_fallthru
          _
      $region132: #{tpu_custom_call.1} parent=5 // pred_fallthru
        _
    $region6: #{tpu_custom_call.1} parent=1 // loop_footer
      %s38 = sadd.s32 1, %s34
    $region7: #{tpu_custom_call.1} parent=1 // loop_footer_branch
      %33 = sbr.rel target = $region3
    $region8: #{tpu_custom_call.1} parent=1 // loop_exit
      _
    %1742 = vsyncpa [#allocation4], 1
    %s1743 = scalar_lea.sflag [#allocation4], 1
    %1744 = vsyncpa %s1743, 1
    %1745 = vsyncpa [#allocation7], 1
    %1746 = vsyncpa [#allocation10], 1
    %1747 = vsyncpa [#allocation13], 1
    %1748 = vsyncpa [#allocation5], 1
    %s1749 = scalar_lea.sflag [#allocation5], 1
    %1750 = vsyncpa %s1749, 1

</llo_original>
